<compile_context>
chip_gen: v6e
topology: v6e:2x2x1
jax: 0.10.0
libtpu: 0.0.40
codegen_flags: <defaults>
</compile_context>

<pallas_src>
import jax
import jax.numpy as jnp
from jax.experimental import pallas as pl
from jax.experimental.pallas import tpu as pltpu


# --------------------------------------------------------------------------- #
# Pass 1: pointwise-conv1 + GLU + depthwise FIR (+ bias) + GroupNorm statistics
# --------------------------------------------------------------------------- #
def _dw_stats_kernel(xp_ref, xc_ref, xn_ref, wa_ref, wg_ref, ba_ref, bg_ref,
                     dww_ref, dwb_ref, acc_ref, sum_ref, ssq_ref, hext_ref):
    t = pl.program_id(1)
    n_t = pl.num_programs(1)

    def pw1_glu(x_rows):
        # bf16 operands on the native MXU path, f32 accumulation; GLU in f32.
        xb = x_rows.astype(jnp.bfloat16)
        a = jnp.dot(xb, wa_ref[...], preferred_element_type=jnp.float32) + ba_ref[...]
        g = jnp.dot(xb, wg_ref[...], preferred_element_type=jnp.float32) + bg_ref[...]
        return a * jax.nn.sigmoid(g)

    h_cur = pw1_glu(xc_ref[0])          # (tT, C)
    h_prev = pw1_glu(xp_ref[0])         # (HB, C) halo, recomputed from prev tile
    h_next = pw1_glu(xn_ref[0])         # (HB, C) halo, recomputed from next tile

    # Zero-padding of the depthwise conv at the sample boundaries.
    h_prev = jnp.where(t == 0, 0.0, h_prev)
    h_next = jnp.where(t == n_t - 1, 0.0, h_next)

    hb = h_prev.shape[0]
    t_tile, ch = h_cur.shape

    # Stage [prev-halo | current | next-halo] into an aligned scratch buffer.
    hext_ref[0:hb, :] = h_prev
    hext_ref[hb:hb + t_tile, :] = h_cur
    hext_ref[hb + t_tile:hb + t_tile + hb, :] = h_next
    hx = hext_ref[...]                  # (tT + 2*HB, C)

    dw = dww_ref[...]                   # (K, C), loaded once (taps hoisted)
    k_taps = dw.shape[0]
    pad = (k_taps - 1) // 2
    n_ext = t_tile + 2 * hb

    acc = jnp.zeros((t_tile, ch), jnp.float32)
    for k in range(k_taps):             # static unrolled taps
        # Row shift by (HB - pad + k) via the XLU (otherwise-idle slot); the
        # subsequent [:tT] slice starts at row 0, so it stays sublane-aligned.
        shifted = pltpu.roll(hx, shift=n_ext - (hb - pad + k), axis=0)
        acc = acc + shifted[:t_tile, :] * dw[k]
    acc = acc + dwb_ref[...]

    acc_ref[0] = acc                    # pre-norm activation (f32 intermediate)

    # One-pass GroupNorm statistics: per-channel sum and sum-of-squares,
    # accumulated in the VMEM-resident stats blocks over the time-tile axis.
    @pl.when(t == 0)
    def _init():
        sum_ref[...] = jnp.zeros_like(sum_ref)
        ssq_ref[...] = jnp.zeros_like(ssq_ref)

    sum_ref[0] = sum_ref[0] + jnp.sum(acc, axis=0, keepdims=True)
    ssq_ref[0] = ssq_ref[0] + jnp.sum(acc * acc, axis=0, keepdims=True)


# --------------------------------------------------------------------------- #
# Pass 2: folded GroupNorm affine + ReLU + pointwise-conv2
# --------------------------------------------------------------------------- #
def _norm_pw2_kernel(acc_ref, scale_ref, shift_ref, w2_ref, b2_ref, out_ref):
    y = acc_ref[0] * scale_ref[0] + shift_ref[0]        # (tT, C), f32
    y = jnp.maximum(y, 0.0)                             # ReLU
    out = jnp.dot(y.astype(jnp.bfloat16), w2_ref[...],
                  preferred_element_type=jnp.float32) + b2_ref[...]
    out_ref[0] = out.astype(out_ref.dtype)


def _const_spec(shape):
    rank = len(shape)
    return pl.BlockSpec(shape, lambda b, t, _r=rank: (0,) * _r)


def conv_module_pallas(x, params, *, eps=1e-5, max_time_tile=256):
    """Conformer ConvModule forward. x: (B, T, C) float32, channels-last."""
    wa, wg, ba, bg, dww, dwb, gamma, beta, w2m, b2v = params
    bsz, seq, ch = x.shape
    k_taps = dww.shape[0]
    pad = (k_taps - 1) // 2
    assert k_taps % 2 == 1, "depthwise kernel_size must be odd ('same' padding)"
    assert seq % 8 == 0, "sequence length must be a multiple of 8"

    # Halo rows fetched/recomputed from the neighbouring time tiles.
    hb = max(8, ((pad + 7) // 8) * 8)
    # Time tile: bounds VMEM independently of T (re-derive for v7x's 64 MiB).
    t_tile = None
    for cand in (512, 256, 128, 64, 32, 16, 8):
        if cand <= max_time_tile and seq % cand == 0 and cand >= hb and cand % hb == 0:
            t_tile = cand
            break
    assert t_tile is not None, "could not pick a time tile for this (T, kernel_size)"
    n_t = seq // t_tile
    r = t_tile // hb          # halo blocks per time tile
    n_hb = seq // hb          # halo blocks per sample

    grid = (bsz, n_t)
    tile_map = lambda b, t: (b, t, 0)
    prev_map = lambda b, t: (b, jnp.maximum(t * r - 1, 0), 0)       # clamped
    next_map = lambda b, t: (b, jnp.minimum((t + 1) * r, n_hb - 1), 0)
    samp_map = lambda b, t: (b, 0, 0)

    # Explicit VMEM budget (kept well under v7x's 64 MiB physical VMEM).
    vmem_limit = 48 * 1024 * 1024

    # ---- pass 1 ------------------------------------------------------------
    acc, csum, cssq = pl.pallas_call(
        _dw_stats_kernel,
        out_shape=(
            jax.ShapeDtypeStruct((bsz, seq, ch), jnp.float32),   # pre-norm act
            jax.ShapeDtypeStruct((bsz, 1, ch), jnp.float32),     # per-chan sum
            jax.ShapeDtypeStruct((bsz, 1, ch), jnp.float32),     # per-chan sumsq
        ),
        grid=grid,
        in_specs=[
            pl.BlockSpec((1, hb, ch), prev_map),       # x halo (previous tile)
            pl.BlockSpec((1, t_tile, ch), tile_map),   # x current tile
            pl.BlockSpec((1, hb, ch), next_map),       # x halo (next tile)
            _const_spec(wa.shape), _const_spec(wg.shape),
            _const_spec(ba.shape), _const_spec(bg.shape),
            _const_spec(dww.shape), _const_spec(dwb.shape),
        ],
        out_specs=(
            pl.BlockSpec((1, t_tile, ch), tile_map),
            pl.BlockSpec((1, 1, ch), samp_map),        # resident over t axis
            pl.BlockSpec((1, 1, ch), samp_map),
        ),
        scratch_shapes=[pltpu.VMEM((t_tile + 2 * hb, ch), jnp.float32)],
        compiler_params=pltpu.CompilerParams(
            dimension_semantics=("parallel", "arbitrary"),
            vmem_limit_bytes=vmem_limit,
        ),
        cost_estimate=pl.CostEstimate(
            flops=int(4 * bsz * seq * ch * ch + 2 * bsz * seq * ch * k_taps),
            transcendentals=int(bsz * seq * ch),
            bytes_accessed=int(8 * bsz * seq * ch + 4 * ch * ch),
        ),
    )(x, x, x, wa, wg, ba, bg, dww, dwb)

    # ---- fold GroupNorm(1, C) stats into a per-(sample, channel) affine -----
    inv_n = 1.0 / float(seq * ch)
    mean = jnp.sum(csum[:, 0, :], axis=-1) * inv_n               # (B,)
    ex2 = jnp.sum(cssq[:, 0, :], axis=-1) * inv_n
    var = jnp.maximum(ex2 - mean * mean, 0.0)
    inv_std = jax.lax.rsqrt(var + eps)                           # (B,)
    scale = gamma[None, :] * inv_std[:, None]                    # (B, C)
    shift = beta[None, :] - mean[:, None] * scale
    scale = scale.reshape(bsz, 1, ch).astype(jnp.float32)
    shift = shift.reshape(bsz, 1, ch).astype(jnp.float32)

    # ---- pass 2 ------------------------------------------------------------
    out = pl.pallas_call(
        _norm_pw2_kernel,
        out_shape=jax.ShapeDtypeStruct((bsz, seq, ch), x.dtype),
        grid=grid,
        in_specs=[
            pl.BlockSpec((1, t_tile, ch), tile_map),
            pl.BlockSpec((1, 1, ch), samp_map),
            pl.BlockSpec((1, 1, ch), samp_map),
            _const_spec(w2m.shape), _const_spec(b2v.shape),
        ],
        out_specs=pl.BlockSpec((1, t_tile, ch), tile_map),
        compiler_params=pltpu.CompilerParams(
            dimension_semantics=("parallel", "parallel"),
            vmem_limit_bytes=vmem_limit,
        ),
        cost_estimate=pl.CostEstimate(
            flops=int(2 * bsz * seq * ch * ch),
            transcendentals=0,
            bytes_accessed=int(8 * bsz * seq * ch + 2 * ch * ch),
        ),
    )(acc, scale, shift, w2m, b2v)
    return out


# --------------------------------------------------------------------------- #
# Parameter preparation + pure-JAX reference
# --------------------------------------------------------------------------- #
def prepare_params(torch_params):
    """PyTorch-layout params -> kernel layout. Matmul weights pre-cast to bf16."""
    w1, b1, dw, dwb, gamma, beta, w2, b2 = torch_params
    ch = w2.shape[0]
    wa = w1[:ch, :].T.astype(jnp.bfloat16)                 # (C, C) GLU value half
    wg = w1[ch:, :].T.astype(jnp.bfloat16)                 # (C, C) GLU gate half
    ba = b1[:ch].reshape(1, ch).astype(jnp.float32)
    bg = b1[ch:].reshape(1, ch).astype(jnp.float32)
    dww = jnp.transpose(dw[:, 0, :]).astype(jnp.float32)   # (K, C) taps
    dwbv = dwb.reshape(1, ch).astype(jnp.float32)
    w2m = w2.T.astype(jnp.bfloat16)                        # (C, C)
    b2v = b2.reshape(1, ch).astype(jnp.float32)
    return (wa, wg, ba, bg, dww, dwbv,
            gamma.astype(jnp.float32), beta.astype(jnp.float32), w2m, b2v)


def conv_module_reference(x, torch_params, kernel_size, *,
                          matmul_dtype=jnp.float32, eps=1e-5):
    """Pure-JAX mirror of the PyTorch ConvModule forward (channels-last I/O)."""
    w1, b1, dw, dwb, gamma, beta, w2, b2 = torch_params
    bsz, seq, ch = x.shape
    pad = (kernel_size - 1) // 2

    y = jnp.dot(x.reshape(bsz * seq, ch).astype(matmul_dtype),
                w1.T.astype(matmul_dtype),
                preferred_element_type=jnp.float32).reshape(bsz, seq, 2 * ch) + b1
    a, g = y[..., :ch], y[..., ch:]
    h = a * jax.nn.sigmoid(g)

    dww = jnp.transpose(dw[:, 0, :])                       # (K, C)
    hp = jnp.pad(h, ((0, 0), (pad, pad), (0, 0)))
    acc = sum(hp[:, k:k + seq, :] * dww[k] for k in range(kernel_size)) + dwb

    mean = acc.mean(axis=(1, 2), keepdims=True)
    var = ((acc - mean) ** 2).mean(axis=(1, 2), keepdims=True)
    norm = (acc - mean) * jax.lax.rsqrt(var + eps) * gamma + beta
    act = jnp.maximum(norm, 0.0)

    out = jnp.dot(act.reshape(bsz * seq, ch).astype(matmul_dtype),
                  w2.T.astype(matmul_dtype),
                  preferred_element_type=jnp.float32).reshape(bsz, seq, ch) + b2
    return out


if __name__ == "__main__":
    B, T, C, K = 2, 128, 128, 15     # lane-dense C; T tiled below into 4 tiles
    key = jax.random.PRNGKey(0)
    ks = jax.random.split(key, 9)

    # Deterministic synthetic parameters in PyTorch layouts.
    w1 = jax.random.normal(ks[0], (2 * C, C), jnp.float32) * 0.05  # Conv1d(C,2C,1).weight[:,:,0]
    b1 = jax.random.normal(ks[1], (2 * C,), jnp.float32) * 0.1
    dw = jax.random.normal(ks[2], (C, 1, K), jnp.float32) * 0.1    # depthwise weight (C,1,K)
    dwb = jax.random.normal(ks[3], (C,), jnp.float32) * 0.1
    gamma = 1.0 + 0.1 * jax.random.normal(ks[4], (C,), jnp.float32)  # GroupNorm weight
    beta = 0.1 * jax.random.normal(ks[5], (C,), jnp.float32)         # GroupNorm bias
    w2 = jax.random.normal(ks[6], (C, C), jnp.float32) * 0.05      # Conv1d(C,C,1).weight[:,:,0]
    b2 = jax.random.normal(ks[7], (C,), jnp.float32) * 0.1
    x = jax.random.normal(ks[8], (B, T, C), jnp.float32)

    torch_params = (w1, b1, dw, dwb, gamma, beta, w2, b2)
    kparams = prepare_params(torch_params)

    # max_time_tile=32 so the small demo exercises multi-tile pipelining,
    # cross-tile halos and the accumulated GroupNorm statistics.
    run = jax.jit(lambda xx, pp: conv_module_pallas(xx, pp, max_time_tile=32))
    out = jax.block_until_ready(run(x, kparams))
    assert out.shape == (B, T, C)

    # Tight check vs a reference that mirrors the kernel's bf16-matmul/f32-accum
    # dtype flow (catches structural bugs), plus a looser check vs full f32.
    ref_bf16 = conv_module_reference(x, torch_params, K, matmul_dtype=jnp.bfloat16)
    ref_f32 = conv_module_reference(x, torch_params, K, matmul_dtype=jnp.float32)
    assert jnp.allclose(out, ref_bf16, atol=2e-3, rtol=2e-3), "mismatch vs bf16 reference"
    assert jnp.allclose(out, ref_f32, atol=5e-2, rtol=5e-2), "mismatch vs f32 reference"

    print("KERNEL_OK")
</pallas_src>

<mosaic_0001>
module attributes {stable_mosaic.version = 11 : i64} {
  func.func @_dw_stats_kernel(%arg0: i32, %arg1: i32, %arg2: memref<1x8x128xf32, #tpu.memory_space<vmem>>, %arg3: memref<1x32x128xf32, #tpu.memory_space<vmem>>, %arg4: memref<1x8x128xf32, #tpu.memory_space<vmem>>, %arg5: memref<128x128xbf16, #tpu.memory_space<vmem>>, %arg6: memref<128x128xbf16, #tpu.memory_space<vmem>>, %arg7: memref<1x128xf32, #tpu.memory_space<vmem>>, %arg8: memref<1x128xf32, #tpu.memory_space<vmem>>, %arg9: memref<15x128xf32, #tpu.memory_space<vmem>>, %arg10: memref<1x128xf32, #tpu.memory_space<vmem>>, %arg11: memref<1x32x128xf32, #tpu.memory_space<vmem>>, %arg12: memref<1x1x128xf32, #tpu.memory_space<vmem>>, %arg13: memref<1x1x128xf32, #tpu.memory_space<vmem>>, %arg14: memref<48x128xf32, #tpu.memory_space<vmem>>) attributes {dimension_semantics = [#tpu.dimension_semantics<parallel>, #tpu.dimension_semantics<arbitrary>], iteration_bounds = array<i64: 2, 4>, scalar_prefetch = 0 : i64, scratch_operands = 1 : i64, tpu.core_type = #tpu.core_type<tc>, window_params = [{transform_indices = @transform_0, window_bounds = array<i64: 1, 8, 128>}, {transform_indices = @transform_1, window_bounds = array<i64: 1, 32, 128>}, {transform_indices = @transform_2, window_bounds = array<i64: 1, 8, 128>}, {pipeline_mode = #tpu.pipeline_mode<synchronous>, transform_indices = @transform_3, window_bounds = array<i64: 128, 128>}, {pipeline_mode = #tpu.pipeline_mode<synchronous>, transform_indices = @transform_4, window_bounds = array<i64: 128, 128>}, {pipeline_mode = #tpu.pipeline_mode<synchronous>, transform_indices = @transform_5, window_bounds = array<i64: 1, 128>}, {pipeline_mode = #tpu.pipeline_mode<synchronous>, transform_indices = @transform_6, window_bounds = array<i64: 1, 128>}, {pipeline_mode = #tpu.pipeline_mode<synchronous>, transform_indices = @transform_7, window_bounds = array<i64: 15, 128>}, {pipeline_mode = #tpu.pipeline_mode<synchronous>, transform_indices = @transform_8, window_bounds = array<i64: 1, 128>}, {transform_indices = @transform_9, window_bounds = array<i64: 1, 32, 128>}, {transform_indices = @transform_10, window_bounds = array<i64: 1, 1, 128>}, {transform_indices = @transform_11, window_bounds = array<i64: 1, 1, 128>}]} {
    %c0 = arith.constant 0 : index
    %c0_0 = arith.constant 0 : index
    %c0_1 = arith.constant 0 : index
    %0 = vector.load %arg3[%c0, %c0_0, %c0_1] : memref<1x32x128xf32, #tpu.memory_space<vmem>>, vector<1x32x128xf32>
    %1 = vector.shape_cast %0 : vector<1x32x128xf32> to vector<32x128xf32>
    %2 = arith.truncf %1 : vector<32x128xf32> to vector<32x128xbf16>
    %c0_2 = arith.constant 0 : index
    %c0_3 = arith.constant 0 : index
    %3 = vector.load %arg5[%c0_2, %c0_3] : memref<128x128xbf16, #tpu.memory_space<vmem>>, vector<128x128xbf16>
    %cst = arith.constant dense<0.000000e+00> : vector<32x128xf32>
    %4 = tpu.matmul %2, %3, %cst {dimension_numbers = #tpu.dot_dimension_numbers<[1], [0], [0], [1], [0, 0, 1, 1], [], []>} : vector<32x128xbf16>, vector<128x128xbf16>, vector<32x128xf32> -> vector<32x128xf32>
    %c0_4 = arith.constant 0 : index
    %c0_5 = arith.constant 0 : index
    %5 = vector.load %arg7[%c0_4, %c0_5] : memref<1x128xf32, #tpu.memory_space<vmem>>, vector<1x128xf32>
    %6 = vector.broadcast %5 : vector<1x128xf32> to vector<32x128xf32>
    %7 = arith.addf %4, %6 : vector<32x128xf32>
    %c0_6 = arith.constant 0 : index
    %c0_7 = arith.constant 0 : index
    %8 = vector.load %arg6[%c0_6, %c0_7] : memref<128x128xbf16, #tpu.memory_space<vmem>>, vector<128x128xbf16>
    %cst_8 = arith.constant dense<0.000000e+00> : vector<32x128xf32>
    %9 = tpu.matmul %2, %8, %cst_8 {dimension_numbers = #tpu.dot_dimension_numbers<[1], [0], [0], [1], [0, 0, 1, 1], [], []>} : vector<32x128xbf16>, vector<128x128xbf16>, vector<32x128xf32> -> vector<32x128xf32>
    %c0_9 = arith.constant 0 : index
    %c0_10 = arith.constant 0 : index
    %10 = vector.load %arg8[%c0_9, %c0_10] : memref<1x128xf32, #tpu.memory_space<vmem>>, vector<1x128xf32>
    %11 = vector.broadcast %10 : vector<1x128xf32> to vector<32x128xf32>
    %12 = arith.addf %9, %11 : vector<32x128xf32>
    %13 = arith.negf %12 : vector<32x128xf32>
    %14 = math.exp %13 : vector<32x128xf32>
    %cst_11 = arith.constant 1.000000e+00 : f32
    %15 = vector.broadcast %cst_11 : f32 to vector<32x128xf32>
    %16 = arith.addf %15, %14 : vector<32x128xf32>
    %17 = arith.divf %15, %16 : vector<32x128xf32>
    %18 = arith.mulf %7, %17 : vector<32x128xf32>
    %c0_12 = arith.constant 0 : index
    %c0_13 = arith.constant 0 : index
    %c0_14 = arith.constant 0 : index
    %19 = vector.load %arg2[%c0_12, %c0_13, %c0_14] : memref<1x8x128xf32, #tpu.memory_space<vmem>>, vector<1x8x128xf32>
    %20 = vector.shape_cast %19 : vector<1x8x128xf32> to vector<8x128xf32>
    %21 = arith.truncf %20 : vector<8x128xf32> to vector<8x128xbf16>
    %c0_15 = arith.constant 0 : index
    %c0_16 = arith.constant 0 : index
    %22 = vector.load %arg5[%c0_15, %c0_16] : memref<128x128xbf16, #tpu.memory_space<vmem>>, vector<128x128xbf16>
    %cst_17 = arith.constant dense<0.000000e+00> : vector<8x128xf32>
    %23 = tpu.matmul %21, %22, %cst_17 {dimension_numbers = #tpu.dot_dimension_numbers<[1], [0], [0], [1], [0, 0, 1, 1], [], []>} : vector<8x128xbf16>, vector<128x128xbf16>, vector<8x128xf32> -> vector<8x128xf32>
    %c0_18 = arith.constant 0 : index
    %c0_19 = arith.constant 0 : index
    %24 = vector.load %arg7[%c0_18, %c0_19] : memref<1x128xf32, #tpu.memory_space<vmem>>, vector<1x128xf32>
    %25 = vector.broadcast %24 : vector<1x128xf32> to vector<8x128xf32>
    %26 = arith.addf %23, %25 : vector<8x128xf32>
    %c0_20 = arith.constant 0 : index
    %c0_21 = arith.constant 0 : index
    %27 = vector.load %arg6[%c0_20, %c0_21] : memref<128x128xbf16, #tpu.memory_space<vmem>>, vector<128x128xbf16>
    %cst_22 = arith.constant dense<0.000000e+00> : vector<8x128xf32>
    %28 = tpu.matmul %21, %27, %cst_22 {dimension_numbers = #tpu.dot_dimension_numbers<[1], [0], [0], [1], [0, 0, 1, 1], [], []>} : vector<8x128xbf16>, vector<128x128xbf16>, vector<8x128xf32> -> vector<8x128xf32>
    %c0_23 = arith.constant 0 : index
    %c0_24 = arith.constant 0 : index
    %29 = vector.load %arg8[%c0_23, %c0_24] : memref<1x128xf32, #tpu.memory_space<vmem>>, vector<1x128xf32>
    %30 = vector.broadcast %29 : vector<1x128xf32> to vector<8x128xf32>
    %31 = arith.addf %28, %30 : vector<8x128xf32>
    %32 = arith.negf %31 : vector<8x128xf32>
    %33 = math.exp %32 : vector<8x128xf32>
    %cst_25 = arith.constant 1.000000e+00 : f32
    %34 = vector.broadcast %cst_25 : f32 to vector<8x128xf32>
    %35 = arith.addf %34, %33 : vector<8x128xf32>
    %36 = arith.divf %34, %35 : vector<8x128xf32>
    %37 = arith.mulf %26, %36 : vector<8x128xf32>
    %c0_26 = arith.constant 0 : index
    %c0_27 = arith.constant 0 : index
    %c0_28 = arith.constant 0 : index
    %38 = vector.load %arg4[%c0_26, %c0_27, %c0_28] : memref<1x8x128xf32, #tpu.memory_space<vmem>>, vector<1x8x128xf32>
    %39 = vector.shape_cast %38 : vector<1x8x128xf32> to vector<8x128xf32>
    %40 = arith.truncf %39 : vector<8x128xf32> to vector<8x128xbf16>
    %c0_29 = arith.constant 0 : index
    %c0_30 = arith.constant 0 : index
    %41 = vector.load %arg5[%c0_29, %c0_30] : memref<128x128xbf16, #tpu.memory_space<vmem>>, vector<128x128xbf16>
    %cst_31 = arith.constant dense<0.000000e+00> : vector<8x128xf32>
    %42 = tpu.matmul %40, %41, %cst_31 {dimension_numbers = #tpu.dot_dimension_numbers<[1], [0], [0], [1], [0, 0, 1, 1], [], []>} : vector<8x128xbf16>, vector<128x128xbf16>, vector<8x128xf32> -> vector<8x128xf32>
    %c0_32 = arith.constant 0 : index
    %c0_33 = arith.constant 0 : index
    %43 = vector.load %arg7[%c0_32, %c0_33] : memref<1x128xf32, #tpu.memory_space<vmem>>, vector<1x128xf32>
    %44 = vector.broadcast %43 : vector<1x128xf32> to vector<8x128xf32>
    %45 = arith.addf %42, %44 : vector<8x128xf32>
    %c0_34 = arith.constant 0 : index
    %c0_35 = arith.constant 0 : index
    %46 = vector.load %arg6[%c0_34, %c0_35] : memref<128x128xbf16, #tpu.memory_space<vmem>>, vector<128x128xbf16>
    %cst_36 = arith.constant dense<0.000000e+00> : vector<8x128xf32>
    %47 = tpu.matmul %40, %46, %cst_36 {dimension_numbers = #tpu.dot_dimension_numbers<[1], [0], [0], [1], [0, 0, 1, 1], [], []>} : vector<8x128xbf16>, vector<128x128xbf16>, vector<8x128xf32> -> vector<8x128xf32>
    %c0_37 = arith.constant 0 : index
    %c0_38 = arith.constant 0 : index
    %48 = vector.load %arg8[%c0_37, %c0_38] : memref<1x128xf32, #tpu.memory_space<vmem>>, vector<1x128xf32>
    %49 = vector.broadcast %48 : vector<1x128xf32> to vector<8x128xf32>
    %50 = arith.addf %47, %49 : vector<8x128xf32>
    %51 = arith.negf %50 : vector<8x128xf32>
    %52 = math.exp %51 : vector<8x128xf32>
    %cst_39 = arith.constant 1.000000e+00 : f32
    %53 = vector.broadcast %cst_39 : f32 to vector<8x128xf32>
    %54 = arith.addf %53, %52 : vector<8x128xf32>
    %55 = arith.divf %53, %54 : vector<8x128xf32>
    %56 = arith.mulf %45, %55 : vector<8x128xf32>
    %c0_i32 = arith.constant 0 : i32
    %57 = arith.cmpi eq, %arg1, %c0_i32 : i32
    %cst_40 = arith.constant 0.000000e+00 : f32
    %58 = vector.broadcast %cst_40 : f32 to vector<8x128xf32>
    %59 = arith.select %57, %58, %37 : vector<8x128xf32>
    %c3_i32 = arith.constant 3 : i32
    %60 = arith.cmpi eq, %arg1, %c3_i32 : i32
    %cst_41 = arith.constant 0.000000e+00 : f32
    %61 = vector.broadcast %cst_41 : f32 to vector<8x128xf32>
    %62 = arith.select %60, %61, %56 : vector<8x128xf32>
    %c0_42 = arith.constant 0 : index
    %c0_43 = arith.constant 0 : index
    %63 = vector.load %arg14[%c0_42, %c0_43] : memref<48x128xf32, #tpu.memory_space<vmem>>, vector<8x128xf32>
    tpu.vector_store %arg14[%c0_42, %c0_43], %59 {strides = array<i32>} : memref<48x128xf32, #tpu.memory_space<vmem>>, vector<8x128xf32>,
    %c8 = arith.constant 8 : index
    %c0_44 = arith.constant 0 : index
    %64 = vector.load %arg14[%c8, %c0_44] : memref<48x128xf32, #tpu.memory_space<vmem>>, vector<32x128xf32>
    tpu.vector_store %arg14[%c8, %c0_44], %18 {strides = array<i32>} : memref<48x128xf32, #tpu.memory_space<vmem>>, vector<32x128xf32>,
    %c40 = arith.constant 40 : index
    %c0_45 = arith.constant 0 : index
    %65 = vector.load %arg14[%c40, %c0_45] : memref<48x128xf32, #tpu.memory_space<vmem>>, vector<8x128xf32>
    tpu.vector_store %arg14[%c40, %c0_45], %62 {strides = array<i32>} : memref<48x128xf32, #tpu.memory_space<vmem>>, vector<8x128xf32>,
    %c0_46 = arith.constant 0 : index
    %c0_47 = arith.constant 0 : index
    %66 = vector.load %arg14[%c0_46, %c0_47] : memref<48x128xf32, #tpu.memory_space<vmem>>, vector<48x128xf32>
    %c0_48 = arith.constant 0 : index
    %c0_49 = arith.constant 0 : index
    %67 = vector.load %arg9[%c0_48, %c0_49] : memref<15x128xf32, #tpu.memory_space<vmem>>, vector<15x128xf32>
    %cst_50 = arith.constant 0.000000e+00 : f32
    %68 = vector.broadcast %cst_50 : f32 to vector<32x128xf32>
    %c47_i32 = arith.constant 47 : i32
    %69 = tpu.dynamic_rotate %66 by %c47_i32 dim 0 : vector<48x128xf32>, i32 -> vector<48x128xf32>
    %70 = vector.extract_strided_slice %69 {offsets = [0, 0], sizes = [32, 128], strides = [1, 1]} : vector<48x128xf32> to vector<32x128xf32>
    %71 = vector.extract_strided_slice %67 {offsets = [0, 0], sizes = [1, 128], strides = [1, 1]} : vector<15x128xf32> to vector<1x128xf32>
    %72 = vector.shape_cast %71 : vector<1x128xf32> to vector<128xf32>
    %73 = vector.shape_cast %72 : vector<128xf32> to vector<1x128xf32>
    %74 = vector.broadcast %73 : vector<1x128xf32> to vector<32x128xf32>
    %75 = arith.mulf %70, %74 : vector<32x128xf32>
    %76 = arith.addf %68, %75 : vector<32x128xf32>
    %c46_i32 = arith.constant 46 : i32
    %77 = tpu.dynamic_rotate %66 by %c46_i32 dim 0 : vector<48x128xf32>, i32 -> vector<48x128xf32>
    %78 = vector.extract_strided_slice %77 {offsets = [0, 0], sizes = [32, 128], strides = [1, 1]} : vector<48x128xf32> to vector<32x128xf32>
    %79 = vector.extract_strided_slice %67 {offsets = [1, 0], sizes = [1, 128], strides = [1, 1]} : vector<15x128xf32> to vector<1x128xf32>
    %80 = vector.shape_cast %79 : vector<1x128xf32> to vector<128xf32>
    %81 = vector.shape_cast %80 : vector<128xf32> to vector<1x128xf32>
    %82 = vector.broadcast %81 : vector<1x128xf32> to vector<32x128xf32>
    %83 = arith.mulf %78, %82 : vector<32x128xf32>
    %84 = arith.addf %76, %83 : vector<32x128xf32>
    %c45_i32 = arith.constant 45 : i32
    %85 = tpu.dynamic_rotate %66 by %c45_i32 dim 0 : vector<48x128xf32>, i32 -> vector<48x128xf32>
    %86 = vector.extract_strided_slice %85 {offsets = [0, 0], sizes = [32, 128], strides = [1, 1]} : vector<48x128xf32> to vector<32x128xf32>
    %87 = vector.extract_strided_slice %67 {offsets = [2, 0], sizes = [1, 128], strides = [1, 1]} : vector<15x128xf32> to vector<1x128xf32>
    %88 = vector.shape_cast %87 : vector<1x128xf32> to vector<128xf32>
    %89 = vector.shape_cast %88 : vector<128xf32> to vector<1x128xf32>
    %90 = vector.broadcast %89 : vector<1x128xf32> to vector<32x128xf32>
    %91 = arith.mulf %86, %90 : vector<32x128xf32>
    %92 = arith.addf %84, %91 : vector<32x128xf32>
    %c44_i32 = arith.constant 44 : i32
    %93 = tpu.dynamic_rotate %66 by %c44_i32 dim 0 : vector<48x128xf32>, i32 -> vector<48x128xf32>
    %94 = vector.extract_strided_slice %93 {offsets = [0, 0], sizes = [32, 128], strides = [1, 1]} : vector<48x128xf32> to vector<32x128xf32>
    %95 = vector.extract_strided_slice %67 {offsets = [3, 0], sizes = [1, 128], strides = [1, 1]} : vector<15x128xf32> to vector<1x128xf32>
    %96 = vector.shape_cast %95 : vector<1x128xf32> to vector<128xf32>
    %97 = vector.shape_cast %96 : vector<128xf32> to vector<1x128xf32>
    %98 = vector.broadcast %97 : vector<1x128xf32> to vector<32x128xf32>
    %99 = arith.mulf %94, %98 : vector<32x128xf32>
    %100 = arith.addf %92, %99 : vector<32x128xf32>
    %c43_i32 = arith.constant 43 : i32
    %101 = tpu.dynamic_rotate %66 by %c43_i32 dim 0 : vector<48x128xf32>, i32 -> vector<48x128xf32>
    %102 = vector.extract_strided_slice %101 {offsets = [0, 0], sizes = [32, 128], strides = [1, 1]} : vector<48x128xf32> to vector<32x128xf32>
    %103 = vector.extract_strided_slice %67 {offsets = [4, 0], sizes = [1, 128], strides = [1, 1]} : vector<15x128xf32> to vector<1x128xf32>
    %104 = vector.shape_cast %103 : vector<1x128xf32> to vector<128xf32>
    %105 = vector.shape_cast %104 : vector<128xf32> to vector<1x128xf32>
    %106 = vector.broadcast %105 : vector<1x128xf32> to vector<32x128xf32>
    %107 = arith.mulf %102, %106 : vector<32x128xf32>
    %108 = arith.addf %100, %107 : vector<32x128xf32>
    %c42_i32 = arith.constant 42 : i32
    %109 = tpu.dynamic_rotate %66 by %c42_i32 dim 0 : vector<48x128xf32>, i32 -> vector<48x128xf32>
    %110 = vector.extract_strided_slice %109 {offsets = [0, 0], sizes = [32, 128], strides = [1, 1]} : vector<48x128xf32> to vector<32x128xf32>
    %111 = vector.extract_strided_slice %67 {offsets = [5, 0], sizes = [1, 128], strides = [1, 1]} : vector<15x128xf32> to vector<1x128xf32>
    %112 = vector.shape_cast %111 : vector<1x128xf32> to vector<128xf32>
    %113 = vector.shape_cast %112 : vector<128xf32> to vector<1x128xf32>
    %114 = vector.broadcast %113 : vector<1x128xf32> to vector<32x128xf32>
    %115 = arith.mulf %110, %114 : vector<32x128xf32>
    %116 = arith.addf %108, %115 : vector<32x128xf32>
    %c41_i32 = arith.constant 41 : i32
    %117 = tpu.dynamic_rotate %66 by %c41_i32 dim 0 : vector<48x128xf32>, i32 -> vector<48x128xf32>
    %118 = vector.extract_strided_slice %117 {offsets = [0, 0], sizes = [32, 128], strides = [1, 1]} : vector<48x128xf32> to vector<32x128xf32>
    %119 = vector.extract_strided_slice %67 {offsets = [6, 0], sizes = [1, 128], strides = [1, 1]} : vector<15x128xf32> to vector<1x128xf32>
    %120 = vector.shape_cast %119 : vector<1x128xf32> to vector<128xf32>
    %121 = vector.shape_cast %120 : vector<128xf32> to vector<1x128xf32>
    %122 = vector.broadcast %121 : vector<1x128xf32> to vector<32x128xf32>
    %123 = arith.mulf %118, %122 : vector<32x128xf32>
    %124 = arith.addf %116, %123 : vector<32x128xf32>
    %c40_i32 = arith.constant 40 : i32
    %125 = tpu.dynamic_rotate %66 by %c40_i32 dim 0 : vector<48x128xf32>, i32 -> vector<48x128xf32>
    %126 = vector.extract_strided_slice %125 {offsets = [0, 0], sizes = [32, 128], strides = [1, 1]} : vector<48x128xf32> to vector<32x128xf32>
    %127 = vector.extract_strided_slice %67 {offsets = [7, 0], sizes = [1, 128], strides = [1, 1]} : vector<15x128xf32> to vector<1x128xf32>
    %128 = vector.shape_cast %127 : vector<1x128xf32> to vector<128xf32>
    %129 = vector.shape_cast %128 : vector<128xf32> to vector<1x128xf32>
    %130 = vector.broadcast %129 : vector<1x128xf32> to vector<32x128xf32>
    %131 = arith.mulf %126, %130 : vector<32x128xf32>
    %132 = arith.addf %124, %131 : vector<32x128xf32>
    %c39_i32 = arith.constant 39 : i32
    %133 = tpu.dynamic_rotate %66 by %c39_i32 dim 0 : vector<48x128xf32>, i32 -> vector<48x128xf32>
    %134 = vector.extract_strided_slice %133 {offsets = [0, 0], sizes = [32, 128], strides = [1, 1]} : vector<48x128xf32> to vector<32x128xf32>
    %135 = vector.extract_strided_slice %67 {offsets = [8, 0], sizes = [1, 128], strides = [1, 1]} : vector<15x128xf32> to vector<1x128xf32>
    %136 = vector.shape_cast %135 : vector<1x128xf32> to vector<128xf32>
    %137 = vector.shape_cast %136 : vector<128xf32> to vector<1x128xf32>
    %138 = vector.broadcast %137 : vector<1x128xf32> to vector<32x128xf32>
    %139 = arith.mulf %134, %138 : vector<32x128xf32>
    %140 = arith.addf %132, %139 : vector<32x128xf32>
    %c38_i32 = arith.constant 38 : i32
    %141 = tpu.dynamic_rotate %66 by %c38_i32 dim 0 : vector<48x128xf32>, i32 -> vector<48x128xf32>
    %142 = vector.extract_strided_slice %141 {offsets = [0, 0], sizes = [32, 128], strides = [1, 1]} : vector<48x128xf32> to vector<32x128xf32>
    %143 = vector.extract_strided_slice %67 {offsets = [9, 0], sizes = [1, 128], strides = [1, 1]} : vector<15x128xf32> to vector<1x128xf32>
    %144 = vector.shape_cast %143 : vector<1x128xf32> to vector<128xf32>
    %145 = vector.shape_cast %144 : vector<128xf32> to vector<1x128xf32>
    %146 = vector.broadcast %145 : vector<1x128xf32> to vector<32x128xf32>
    %147 = arith.mulf %142, %146 : vector<32x128xf32>
    %148 = arith.addf %140, %147 : vector<32x128xf32>
    %c37_i32 = arith.constant 37 : i32
    %149 = tpu.dynamic_rotate %66 by %c37_i32 dim 0 : vector<48x128xf32>, i32 -> vector<48x128xf32>
    %150 = vector.extract_strided_slice %149 {offsets = [0, 0], sizes = [32, 128], strides = [1, 1]} : vector<48x128xf32> to vector<32x128xf32>
    %151 = vector.extract_strided_slice %67 {offsets = [10, 0], sizes = [1, 128], strides = [1, 1]} : vector<15x128xf32> to vector<1x128xf32>
    %152 = vector.shape_cast %151 : vector<1x128xf32> to vector<128xf32>
    %153 = vector.shape_cast %152 : vector<128xf32> to vector<1x128xf32>
    %154 = vector.broadcast %153 : vector<1x128xf32> to vector<32x128xf32>
    %155 = arith.mulf %150, %154 : vector<32x128xf32>
    %156 = arith.addf %148, %155 : vector<32x128xf32>
    %c36_i32 = arith.constant 36 : i32
    %157 = tpu.dynamic_rotate %66 by %c36_i32 dim 0 : vector<48x128xf32>, i32 -> vector<48x128xf32>
    %158 = vector.extract_strided_slice %157 {offsets = [0, 0], sizes = [32, 128], strides = [1, 1]} : vector<48x128xf32> to vector<32x128xf32>
    %159 = vector.extract_strided_slice %67 {offsets = [11, 0], sizes = [1, 128], strides = [1, 1]} : vector<15x128xf32> to vector<1x128xf32>
    %160 = vector.shape_cast %159 : vector<1x128xf32> to vector<128xf32>
    %161 = vector.shape_cast %160 : vector<128xf32> to vector<1x128xf32>
    %162 = vector.broadcast %161 : vector<1x128xf32> to vector<32x128xf32>
    %163 = arith.mulf %158, %162 : vector<32x128xf32>
    %164 = arith.addf %156, %163 : vector<32x128xf32>
    %c35_i32 = arith.constant 35 : i32
    %165 = tpu.dynamic_rotate %66 by %c35_i32 dim 0 : vector<48x128xf32>, i32 -> vector<48x128xf32>
    %166 = vector.extract_strided_slice %165 {offsets = [0, 0], sizes = [32, 128], strides = [1, 1]} : vector<48x128xf32> to vector<32x128xf32>
    %167 = vector.extract_strided_slice %67 {offsets = [12, 0], sizes = [1, 128], strides = [1, 1]} : vector<15x128xf32> to vector<1x128xf32>
    %168 = vector.shape_cast %167 : vector<1x128xf32> to vector<128xf32>
    %169 = vector.shape_cast %168 : vector<128xf32> to vector<1x128xf32>
    %170 = vector.broadcast %169 : vector<1x128xf32> to vector<32x128xf32>
    %171 = arith.mulf %166, %170 : vector<32x128xf32>
    %172 = arith.addf %164, %171 : vector<32x128xf32>
    %c34_i32 = arith.constant 34 : i32
    %173 = tpu.dynamic_rotate %66 by %c34_i32 dim 0 : vector<48x128xf32>, i32 -> vector<48x128xf32>
    %174 = vector.extract_strided_slice %173 {offsets = [0, 0], sizes = [32, 128], strides = [1, 1]} : vector<48x128xf32> to vector<32x128xf32>
    %175 = vector.extract_strided_slice %67 {offsets = [13, 0], sizes = [1, 128], strides = [1, 1]} : vector<15x128xf32> to vector<1x128xf32>
    %176 = vector.shape_cast %175 : vector<1x128xf32> to vector<128xf32>
    %177 = vector.shape_cast %176 : vector<128xf32> to vector<1x128xf32>
    %178 = vector.broadcast %177 : vector<1x128xf32> to vector<32x128xf32>
    %179 = arith.mulf %174, %178 : vector<32x128xf32>
    %180 = arith.addf %172, %179 : vector<32x128xf32>
    %c33_i32 = arith.constant 33 : i32
    %181 = tpu.dynamic_rotate %66 by %c33_i32 dim 0 : vector<48x128xf32>, i32 -> vector<48x128xf32>
    %182 = vector.extract_strided_slice %181 {offsets = [0, 0], sizes = [32, 128], strides = [1, 1]} : vector<48x128xf32> to vector<32x128xf32>
    %183 = vector.extract_strided_slice %67 {offsets = [14, 0], sizes = [1, 128], strides = [1, 1]} : vector<15x128xf32> to vector<1x128xf32>
    %184 = vector.shape_cast %183 : vector<1x128xf32> to vector<128xf32>
    %185 = vector.shape_cast %184 : vector<128xf32> to vector<1x128xf32>
    %186 = vector.broadcast %185 : vector<1x128xf32> to vector<32x128xf32>
    %187 = arith.mulf %182, %186 : vector<32x128xf32>
    %188 = arith.addf %180, %187 : vector<32x128xf32>
    %c0_51 = arith.constant 0 : index
    %c0_52 = arith.constant 0 : index
    %189 = vector.load %arg10[%c0_51, %c0_52] : memref<1x128xf32, #tpu.memory_space<vmem>>, vector<1x128xf32>
    %190 = vector.broadcast %189 : vector<1x128xf32> to vector<32x128xf32>
    %191 = arith.addf %188, %190 : vector<32x128xf32>
    %c0_53 = arith.constant 0 : index
    %c0_54 = arith.constant 0 : index
    %c0_55 = arith.constant 0 : index
    %192 = vector.load %arg11[%c0_53, %c0_54, %c0_55] : memref<1x32x128xf32, #tpu.memory_space<vmem>>, vector<1x32x128xf32>
    %193 = vector.shape_cast %192 : vector<1x32x128xf32> to vector<32x128xf32>
    %194 = vector.shape_cast %191 : vector<32x128xf32> to vector<1x32x128xf32>
    tpu.vector_store %arg11[%c0_53, %c0_54, %c0_55], %194 {strides = array<i32>} : memref<1x32x128xf32, #tpu.memory_space<vmem>>, vector<1x32x128xf32>,
    %c0_i32_56 = arith.constant 0 : i32
    %195 = arith.cmpi eq, %arg1, %c0_i32_56 : i32
    %196 = arith.extui %195 : i1 to i32
    %c0_i32_57 = arith.constant 0 : i32
    %197 = arith.cmpi ne, %196, %c0_i32_57 : i32
    scf.if %197 {
      %cst_72 = arith.constant 0.000000e+00 : f32
      %215 = vector.broadcast %cst_72 : f32 to vector<1x1x128xf32>
      %c0_73 = arith.constant 0 : index
      %c0_74 = arith.constant 0 : index
      %c0_75 = arith.constant 0 : index
      %216 = vector.load %arg12[%c0_73, %c0_74, %c0_75] : memref<1x1x128xf32, #tpu.memory_space<vmem>>, vector<1x1x128xf32>
      tpu.vector_store %arg12[%c0_73, %c0_74, %c0_75], %215 {strides = array<i32>} : memref<1x1x128xf32, #tpu.memory_space<vmem>>, vector<1x1x128xf32>,
      %cst_76 = arith.constant 0.000000e+00 : f32
      %217 = vector.broadcast %cst_76 : f32 to vector<1x1x128xf32>
      %c0_77 = arith.constant 0 : index
      %c0_78 = arith.constant 0 : index
      %c0_79 = arith.constant 0 : index
      %218 = vector.load %arg13[%c0_77, %c0_78, %c0_79] : memref<1x1x128xf32, #tpu.memory_space<vmem>>, vector<1x1x128xf32>
      tpu.vector_store %arg13[%c0_77, %c0_78, %c0_79], %217 {strides = array<i32>} : memref<1x1x128xf32, #tpu.memory_space<vmem>>, vector<1x1x128xf32>,
    } else {
    }
    %c0_58 = arith.constant 0 : index
    %c0_59 = arith.constant 0 : index
    %c0_60 = arith.constant 0 : index
    %198 = vector.load %arg12[%c0_58, %c0_59, %c0_60] : memref<1x1x128xf32, #tpu.memory_space<vmem>>, vector<1x1x128xf32>
    %199 = vector.shape_cast %198 : vector<1x1x128xf32> to vector<1x128xf32>
    %cst_61 = arith.constant dense<0.000000e+00> : vector<128xf32>
    %200 = vector.multi_reduction <add>, %191, %cst_61 [0] : vector<32x128xf32> to vector<128xf32>
    %201 = vector.shape_cast %200 : vector<128xf32> to vector<1x128xf32>
    %202 = arith.addf %199, %201 : vector<1x128xf32>
    %c0_62 = arith.constant 0 : index
    %c0_63 = arith.constant 0 : index
    %c0_64 = arith.constant 0 : index
    %203 = vector.load %arg12[%c0_62, %c0_63, %c0_64] : memref<1x1x128xf32, #tpu.memory_space<vmem>>, vector<1x1x128xf32>
    %204 = vector.shape_cast %203 : vector<1x1x128xf32> to vector<1x128xf32>
    %205 = vector.shape_cast %202 : vector<1x128xf32> to vector<1x1x128xf32>
    tpu.vector_store %arg12[%c0_62, %c0_63, %c0_64], %205 {strides = array<i32>} : memref<1x1x128xf32, #tpu.memory_space<vmem>>, vector<1x1x128xf32>,
    %c0_65 = arith.constant 0 : index
    %c0_66 = arith.constant 0 : index
    %c0_67 = arith.constant 0 : index
    %206 = vector.load %arg13[%c0_65, %c0_66, %c0_67] : memref<1x1x128xf32, #tpu.memory_space<vmem>>, vector<1x1x128xf32>
    %207 = vector.shape_cast %206 : vector<1x1x128xf32> to vector<1x128xf32>
    %208 = arith.mulf %191, %191 : vector<32x128xf32>
    %cst_68 = arith.constant dense<0.000000e+00> : vector<128xf32>
    %209 = vector.multi_reduction <add>, %208, %cst_68 [0] : vector<32x128xf32> to vector<128xf32>
    %210 = vector.shape_cast %209 : vector<128xf32> to vector<1x128xf32>
    %211 = arith.addf %207, %210 : vector<1x128xf32>
    %c0_69 = arith.constant 0 : index
    %c0_70 = arith.constant 0 : index
    %c0_71 = arith.constant 0 : index
    %212 = vector.load %arg13[%c0_69, %c0_70, %c0_71] : memref<1x1x128xf32, #tpu.memory_space<vmem>>, vector<1x1x128xf32>
    %213 = vector.shape_cast %212 : vector<1x1x128xf32> to vector<1x128xf32>
    %214 = vector.shape_cast %211 : vector<1x128xf32> to vector<1x1x128xf32>
    tpu.vector_store %arg13[%c0_69, %c0_70, %c0_71], %214 {strides = array<i32>} : memref<1x1x128xf32, #tpu.memory_space<vmem>>, vector<1x1x128xf32>,
    return
  }
  func.func @transform_0(%arg0: i32, %arg1: i32) -> (i32, i32, i32) {
    %c4_i32 = arith.constant 4 : i32
    %0 = arith.muli %arg1, %c4_i32 : i32
    %c1_i32 = arith.constant 1 : i32
    %1 = arith.subi %0, %c1_i32 : i32
    %c0_i32 = arith.constant 0 : i32
    %2 = arith.maxsi %1, %c0_i32 : i32
    %c0_i32_0 = arith.constant 0 : i32
    %c0_i32_1 = arith.constant 0 : i32
    return %arg0, %2, %c0_i32_0 : i32, i32, i32
  }
  func.func @transform_1(%arg0: i32, %arg1: i32) -> (i32, i32, i32) {
    %c0_i32 = arith.constant 0 : i32
    %c0_i32_0 = arith.constant 0 : i32
    return %arg0, %arg1, %c0_i32 : i32, i32, i32
  }
  func.func @transform_2(%arg0: i32, %arg1: i32) -> (i32, i32, i32) {
    %c1_i32 = arith.constant 1 : i32
    %0 = arith.addi %arg1, %c1_i32 : i32
    %c4_i32 = arith.constant 4 : i32
    %1 = arith.muli %0, %c4_i32 : i32
    %c15_i32 = arith.constant 15 : i32
    %2 = arith.minsi %1, %c15_i32 : i32
    %c0_i32 = arith.constant 0 : i32
    %c0_i32_0 = arith.constant 0 : i32
    return %arg0, %2, %c0_i32 : i32, i32, i32
  }
  func.func @transform_3(%arg0: i32, %arg1: i32) -> (i32, i32) {
    %c0_i32 = arith.constant 0 : i32
    %c0_i32_0 = arith.constant 0 : i32
    %c0_i32_1 = arith.constant 0 : i32
    return %c0_i32, %c0_i32_0 : i32, i32
  }
  func.func @transform_4(%arg0: i32, %arg1: i32) -> (i32, i32) {
    %c0_i32 = arith.constant 0 : i32
    %c0_i32_0 = arith.constant 0 : i32
    %c0_i32_1 = arith.constant 0 : i32
    return %c0_i32, %c0_i32_0 : i32, i32
  }
  func.func @transform_5(%arg0: i32, %arg1: i32) -> (i32, i32) {
    %c0_i32 = arith.constant 0 : i32
    %c0_i32_0 = arith.constant 0 : i32
    %c0_i32_1 = arith.constant 0 : i32
    return %c0_i32, %c0_i32_0 : i32, i32
  }
  func.func @transform_6(%arg0: i32, %arg1: i32) -> (i32, i32) {
    %c0_i32 = arith.constant 0 : i32
    %c0_i32_0 = arith.constant 0 : i32
    %c0_i32_1 = arith.constant 0 : i32
    return %c0_i32, %c0_i32_0 : i32, i32
  }
  func.func @transform_7(%arg0: i32, %arg1: i32) -> (i32, i32) {
    %c0_i32 = arith.constant 0 : i32
    %c0_i32_0 = arith.constant 0 : i32
    %c0_i32_1 = arith.constant 0 : i32
    return %c0_i32, %c0_i32_0 : i32, i32
  }
  func.func @transform_8(%arg0: i32, %arg1: i32) -> (i32, i32) {
    %c0_i32 = arith.constant 0 : i32
    %c0_i32_0 = arith.constant 0 : i32
    %c0_i32_1 = arith.constant 0 : i32
    return %c0_i32, %c0_i32_0 : i32, i32
  }
  func.func @transform_9(%arg0: i32, %arg1: i32) -> (i32, i32, i32) {
    %c0_i32 = arith.constant 0 : i32
    %c0_i32_0 = arith.constant 0 : i32
    return %arg0, %arg1, %c0_i32 : i32, i32, i32
  }
  func.func @transform_10(%arg0: i32, %arg1: i32) -> (i32, i32, i32) {
    %c0_i32 = arith.constant 0 : i32
    %c0_i32_0 = arith.constant 0 : i32
    %c0_i32_1 = arith.constant 0 : i32
    return %arg0, %c0_i32, %c0_i32_0 : i32, i32, i32
  }
  func.func @transform_11(%arg0: i32, %arg1: i32) -> (i32, i32, i32) {
    %c0_i32 = arith.constant 0 : i32
    %c0_i32_0 = arith.constant 0 : i32
    %c0_i32_1 = arith.constant 0 : i32
    return %arg0, %c0_i32, %c0_i32_0 : i32, i32, i32
  }
}

module attributes {stable_mosaic.version = 11 : i64} {
  func.func @_norm_pw2_kernel(%arg0: i32, %arg1: i32, %arg2: memref<1x32x128xf32, #tpu.memory_space<vmem>>, %arg3: memref<1x1x128xf32, #tpu.memory_space<vmem>>, %arg4: memref<1x1x128xf32, #tpu.memory_space<vmem>>, %arg5: memref<128x128xbf16, #tpu.memory_space<vmem>>, %arg6: memref<1x128xf32, #tpu.memory_space<vmem>>, %arg7: memref<1x32x128xf32, #tpu.memory_space<vmem>>) attributes {dimension_semantics = [#tpu.dimension_semantics<parallel>, #tpu.dimension_semantics<parallel>], iteration_bounds = array<i64: 2, 4>, scalar_prefetch = 0 : i64, scratch_operands = 0 : i64, tpu.core_type = #tpu.core_type<tc>, window_params = [{transform_indices = @transform_0, window_bounds = array<i64: 1, 32, 128>}, {transform_indices = @transform_1, window_bounds = array<i64: 1, 1, 128>}, {transform_indices = @transform_2, window_bounds = array<i64: 1, 1, 128>}, {pipeline_mode = #tpu.pipeline_mode<synchronous>, transform_indices = @transform_3, window_bounds = array<i64: 128, 128>}, {pipeline_mode = #tpu.pipeline_mode<synchronous>, transform_indices = @transform_4, window_bounds = array<i64: 1, 128>}, {transform_indices = @transform_5, window_bounds = array<i64: 1, 32, 128>}]} {
    %c0 = arith.constant 0 : index
    %c0_0 = arith.constant 0 : index
    %c0_1 = arith.constant 0 : index
    %0 = vector.load %arg2[%c0, %c0_0, %c0_1] : memref<1x32x128xf32, #tpu.memory_space<vmem>>, vector<1x32x128xf32>
    %1 = vector.shape_cast %0 : vector<1x32x128xf32> to vector<32x128xf32>
    %c0_2 = arith.constant 0 : index
    %c0_3 = arith.constant 0 : index
    %c0_4 = arith.constant 0 : index
    %2 = vector.load %arg3[%c0_2, %c0_3, %c0_4] : memref<1x1x128xf32, #tpu.memory_space<vmem>>, vector<1x1x128xf32>
    %3 = vector.shape_cast %2 : vector<1x1x128xf32> to vector<1x128xf32>
    %4 = vector.broadcast %3 : vector<1x128xf32> to vector<32x128xf32>
    %5 = arith.mulf %1, %4 : vector<32x128xf32>
    %c0_5 = arith.constant 0 : index
    %c0_6 = arith.constant 0 : index
    %c0_7 = arith.constant 0 : index
    %6 = vector.load %arg4[%c0_5, %c0_6, %c0_7] : memref<1x1x128xf32, #tpu.memory_space<vmem>>, vector<1x1x128xf32>
    %7 = vector.shape_cast %6 : vector<1x1x128xf32> to vector<1x128xf32>
    %8 = vector.broadcast %7 : vector<1x128xf32> to vector<32x128xf32>
    %9 = arith.addf %5, %8 : vector<32x128xf32>
    %cst = arith.constant 0.000000e+00 : f32
    %10 = vector.broadcast %cst : f32 to vector<32x128xf32>
    %11 = arith.maximumf %9, %10 : vector<32x128xf32>
    %12 = arith.truncf %11 : vector<32x128xf32> to vector<32x128xbf16>
    %c0_8 = arith.constant 0 : index
    %c0_9 = arith.constant 0 : index
    %13 = vector.load %arg5[%c0_8, %c0_9] : memref<128x128xbf16, #tpu.memory_space<vmem>>, vector<128x128xbf16>
    %cst_10 = arith.constant dense<0.000000e+00> : vector<32x128xf32>
    %14 = tpu.matmul %12, %13, %cst_10 {dimension_numbers = #tpu.dot_dimension_numbers<[1], [0], [0], [1], [0, 0, 1, 1], [], []>} : vector<32x128xbf16>, vector<128x128xbf16>, vector<32x128xf32> -> vector<32x128xf32>
    %c0_11 = arith.constant 0 : index
    %c0_12 = arith.constant 0 : index
    %15 = vector.load %arg6[%c0_11, %c0_12] : memref<1x128xf32, #tpu.memory_space<vmem>>, vector<1x128xf32>
    %16 = vector.broadcast %15 : vector<1x128xf32> to vector<32x128xf32>
    %17 = arith.addf %14, %16 : vector<32x128xf32>
    %c0_13 = arith.constant 0 : index
    %c0_14 = arith.constant 0 : index
    %c0_15 = arith.constant 0 : index
    %18 = vector.load %arg7[%c0_13, %c0_14, %c0_15] : memref<1x32x128xf32, #tpu.memory_space<vmem>>, vector<1x32x128xf32>
    %19 = vector.shape_cast %18 : vector<1x32x128xf32> to vector<32x128xf32>
    %20 = vector.shape_cast %17 : vector<32x128xf32> to vector<1x32x128xf32>
    tpu.vector_store %arg7[%c0_13, %c0_14, %c0_15], %20 {strides = array<i32>} : memref<1x32x128xf32, #tpu.memory_space<vmem>>, vector<1x32x128xf32>,
    return
  }
  func.func @transform_0(%arg0: i32, %arg1: i32) -> (i32, i32, i32) {
    %c0_i32 = arith.constant 0 : i32
    %c0_i32_0 = arith.constant 0 : i32
    return %arg0, %arg1, %c0_i32 : i32, i32, i32
  }
  func.func @transform_1(%arg0: i32, %arg1: i32) -> (i32, i32, i32) {
    %c0_i32 = arith.constant 0 : i32
    %c0_i32_0 = arith.constant 0 : i32
    %c0_i32_1 = arith.constant 0 : i32
    return %arg0, %c0_i32, %c0_i32_0 : i32, i32, i32
  }
  func.func @transform_2(%arg0: i32, %arg1: i32) -> (i32, i32, i32) {
    %c0_i32 = arith.constant 0 : i32
    %c0_i32_0 = arith.constant 0 : i32
    %c0_i32_1 = arith.constant 0 : i32
    return %arg0, %c0_i32, %c0_i32_0 : i32, i32, i32
  }
  func.func @transform_3(%arg0: i32, %arg1: i32) -> (i32, i32) {
    %c0_i32 = arith.constant 0 : i32
    %c0_i32_0 = arith.constant 0 : i32
    %c0_i32_1 = arith.constant 0 : i32
    return %c0_i32, %c0_i32_0 : i32, i32
  }
  func.func @transform_4(%arg0: i32, %arg1: i32) -> (i32, i32) {
    %c0_i32 = arith.constant 0 : i32
    %c0_i32_0 = arith.constant 0 : i32
    %c0_i32_1 = arith.constant 0 : i32
    return %c0_i32, %c0_i32_0 : i32, i32
  }
  func.func @transform_5(%arg0: i32, %arg1: i32) -> (i32, i32, i32) {
    %c0_i32 = arith.constant 0 : i32
    %c0_i32_0 = arith.constant 0 : i32
    return %arg0, %arg1, %c0_i32 : i32, i32, i32
  }
}

</mosaic_0001>

<llo_original>
// kernel: _lambda_.3
$region0: #{_lambda_.3}
  #allocation0 [shape = 'u32[]', space=smem, size = 0x4, offset = 0x4, fixed_abs, tag = 'smem constant byte address 0x4 - core index']
  #allocation1 [shape = 'u32[144,128]{1,0:T(1,128)}', space=vmem, size = 0x12000, scoped, tag = 'internal scratch']
  %s0 = inlined_call_operand.vmem [shape: f32[2,128,128], index: 0, kind: input, shape index: {}]
  %s1 = inlined_call_operand.vmem [shape: f32[2,1,128], index: 1, kind: input, shape index: {}]
  %s2 = inlined_call_operand.vmem [shape: f32[2,1,128], index: 2, kind: input, shape index: {}]
  %s3 = inlined_call_operand.vmem [shape: bf16[128,128], index: 3, kind: input, shape index: {}]
  %s4 = inlined_call_operand.vmem [shape: f32[1,128], index: 4, kind: input, shape index: {}]
  %s5 = inlined_call_operand.hbm [shape: f32[2,128,128], index: 5, kind: output, shape index: {}]
  %s6 = sld [smem:[#allocation0]]
  $region53: #{_lambda_.3} parent=0
    _
  %s8 = ssub.s32 1, %s6
  %s9 = scalar_select 0, %s8, %s6
  $region1: #{_lambda_.3} parent=0
    #allocation2 [shape = 'u8[32768]{0}', space=vmem, size = 0x8000, scoped, tag = 'output window, operand 0']
    #allocation3 [shape = 's32[2]{0}', space=sflag, size = 0x8, scoped, tag = 'scoped memory for _lambda_.3']
    %10 = vsyncpa [#allocation3], 0
    %s11 = scalar_lea.sflag [#allocation3], 1
    %12 = vsyncpa %s11, 0
    loop: start=0, step=1, limit=10
    $region2: #{_lambda_.3} parent=1 // loop_pre_header
      _
    $region3: #{_lambda_.3} parent=1 // loop_header
      %s14 = sphi 0, %s18
      %p15 = scmp.ge.s32.totalorder %s14, 10
      %s21 = sphi 0, %s33
      %s22 = sphi 0, %s29
      %s23 = sphi 0, %s21
      %s24 = sphi 0, %s22
      %s25 = sphi 0, %s23
      %s26 = sphi 0, %s24
      %s38 = sphi 0, %s40
      %s41 = sphi 0, %s38
      %s42 = sphi 0, %s41
      %s58 = sphi 0, %s42
      %s64 = sphi 0, %s66
      %s67 = sphi 0, %s64
      %s68 = sphi 0, %s67
      %s84 = sphi 0, %s68
      %s90 = sphi 0, %s92
      %s93 = sphi 0, %s90
      %s94 = sphi 0, %s93
      %s110 = sphi 0, %s94
      %s114 = sphi 0, %s114
      %s116 = sphi 0, %s114
      %s117 = sphi 0, %s116
      %s131 = sphi 0, %s117
      %s135 = sphi 0, %s135
      %s137 = sphi 0, %s135
      %s138 = sphi 0, %s137
      %s152 = sphi 0, %s138
      %s160 = sphi 0, %s162
      %s163 = sphi 0, %s160
      %s164 = sphi 0, %s163
      %s180 = sphi 0, %s164
    $region4: #{_lambda_.3} parent=1 // loop_header_branch
      %17 = sbr.rel (%p15) target = $region8
    $region5: #{_lambda_.3} parent=1 // loop_body
      %s19 = ssub.s32 %s14, 1
      %s20 = ssub.s32 %s14, 2
      %s27 = sadd.s32 1, %s22
      %p28 = scmp.ge.s32.totalorder %s27, 4
      %s29 = scalar_select %p28, 0, %s27
      %s30 = sadd.s32 1, %s21
      %s31 = scalar_select %p28, %s30, %s21
      %p32 = scmp.ge.s32.totalorder %s31, 2
      %s33 = scalar_select %p32, 0, %s31
      %s34 = ssub.s32 %s21, %s33
      %s35 = ssub.s32 %s22, %s29
      %s36 = sor.u32 %s34, %s35
      %p37 = scmp.eq.s32.totalorder %s36, 0
      %s39 = sadd.s32 %s38, 1
      %s40 = scalar_select %p37, %s38, %s39
      %p43 = pneg %p37
      %p44 = scmp.eq.s32.totalorder %s14, 7
      %p45 = por %p43, %p44
      %p46 = scmp.ne.s32.totalorder %s38, %s41
      %p47 = scmp.eq.s32.totalorder %s14, 0
      %p48 = por %p46, %p47
      %p49 = scmp.ne.s32.totalorder %s38, %s41
      %p50 = scmp.eq.s32.totalorder %s19, 7
      %p51 = por %p49, %p50
      %p52 = scmp.ne.s32.totalorder %s41, %s42
      %p53 = scmp.eq.s32.totalorder %s19, 0
      %p54 = por %p52, %p53
      %p55 = scmp.ne.s32.totalorder %s41, %s42
      %p56 = scmp.eq.s32.totalorder %s20, 7
      %p57 = por %p55, %p56
      %p59 = scmp.ne.s32.totalorder %s42, %s58
      %p60 = scmp.eq.s32.totalorder %s20, 0
      %p61 = por %p59, %p60
      %s62 = ssub.s32 %s21, %s33
      %p63 = scmp.eq.s32.totalorder %s62, 0
      %s65 = sadd.s32 %s64, 1
      %s66 = scalar_select %p63, %s64, %s65
      %p69 = pneg %p63
      %p70 = scmp.eq.s32.totalorder %s14, 7
      %p71 = por %p69, %p70
      %p72 = scmp.ne.s32.totalorder %s64, %s67
      %p73 = scmp.eq.s32.totalorder %s14, 0
      %p74 = por %p72, %p73
      %p75 = scmp.ne.s32.totalorder %s64, %s67
      %p76 = scmp.eq.s32.totalorder %s19, 7
      %p77 = por %p75, %p76
      %p78 = scmp.ne.s32.totalorder %s67, %s68
      %p79 = scmp.eq.s32.totalorder %s19, 0
      %p80 = por %p78, %p79
      %p81 = scmp.ne.s32.totalorder %s67, %s68
      %p82 = scmp.eq.s32.totalorder %s20, 7
      %p83 = por %p81, %p82
      %p85 = scmp.ne.s32.totalorder %s68, %s84
      %p86 = scmp.eq.s32.totalorder %s20, 0
      %p87 = por %p85, %p86
      %s88 = ssub.s32 %s21, %s33
      %p89 = scmp.eq.s32.totalorder %s88, 0
      %s91 = sadd.s32 %s90, 1
      %s92 = scalar_select %p89, %s90, %s91
      %p95 = pneg %p89
      %p96 = scmp.eq.s32.totalorder %s14, 7
      %p97 = por %p95, %p96
      %p98 = scmp.ne.s32.totalorder %s90, %s93
      %p99 = scmp.eq.s32.totalorder %s14, 0
      %p100 = por %p98, %p99
      %p101 = scmp.ne.s32.totalorder %s90, %s93
      %p102 = scmp.eq.s32.totalorder %s19, 7
      %p103 = por %p101, %p102
      %p104 = scmp.ne.s32.totalorder %s93, %s94
      %p105 = scmp.eq.s32.totalorder %s19, 0
      %p106 = por %p104, %p105
      %p107 = scmp.ne.s32.totalorder %s93, %s94
      %p108 = scmp.eq.s32.totalorder %s20, 7
      %p109 = por %p107, %p108
      %p111 = scmp.ne.s32.totalorder %s94, %s110
      %p112 = scmp.eq.s32.totalorder %s20, 0
      %p113 = por %p111, %p112
      %s115 = sadd.s32 %s114, 1
      %p118 = scmp.eq.s32.totalorder %s14, 7
      %p119 = scmp.ne.s32.totalorder %s114, %s116
      %p120 = scmp.eq.s32.totalorder %s14, 0
      %p121 = por %p119, %p120
      %p122 = scmp.ne.s32.totalorder %s114, %s116
      %p123 = scmp.eq.s32.totalorder %s19, 7
      %p124 = por %p122, %p123
      %p125 = scmp.ne.s32.totalorder %s116, %s117
      %p126 = scmp.eq.s32.totalorder %s19, 0
      %p127 = por %p125, %p126
      %p128 = scmp.ne.s32.totalorder %s116, %s117
      %p129 = scmp.eq.s32.totalorder %s20, 7
      %p130 = por %p128, %p129
      %p132 = scmp.ne.s32.totalorder %s117, %s131
      %p133 = scmp.eq.s32.totalorder %s20, 0
      %p134 = por %p132, %p133
      %s136 = sadd.s32 %s135, 1
      %p139 = scmp.eq.s32.totalorder %s14, 7
      %p140 = scmp.ne.s32.totalorder %s135, %s137
      %p141 = scmp.eq.s32.totalorder %s14, 0
      %p142 = por %p140, %p141
      %p143 = scmp.ne.s32.totalorder %s135, %s137
      %p144 = scmp.eq.s32.totalorder %s19, 7
      %p145 = por %p143, %p144
      %p146 = scmp.ne.s32.totalorder %s137, %s138
      %p147 = scmp.eq.s32.totalorder %s19, 0
      %p148 = por %p146, %p147
      %p149 = scmp.ne.s32.totalorder %s137, %s138
      %p150 = scmp.eq.s32.totalorder %s20, 7
      %p151 = por %p149, %p150
      %p153 = scmp.ne.s32.totalorder %s138, %s152
      %p154 = scmp.eq.s32.totalorder %s20, 0
      %p155 = por %p153, %p154
      %s156 = ssub.s32 %s21, %s33
      %s157 = ssub.s32 %s22, %s29
      %s158 = sor.u32 %s156, %s157
      %p159 = scmp.eq.s32.totalorder %s158, 0
      %s161 = sadd.s32 %s160, 1
      %s162 = scalar_select %p159, %s160, %s161
      %p165 = pneg %p159
      %p166 = scmp.eq.s32.totalorder %s14, 7
      %p167 = por %p165, %p166
      %p168 = scmp.ne.s32.totalorder %s160, %s163
      %p169 = scmp.eq.s32.totalorder %s14, 0
      %p170 = por %p168, %p169
      %p171 = scmp.ne.s32.totalorder %s160, %s163
      %p172 = scmp.eq.s32.totalorder %s19, 7
      %p173 = por %p171, %p172
      %p174 = scmp.ne.s32.totalorder %s163, %s164
      %p175 = scmp.eq.s32.totalorder %s19, 0
      %p176 = por %p174, %p175
      %p177 = scmp.ne.s32.totalorder %s163, %s164
      %p178 = scmp.eq.s32.totalorder %s20, 7
      %p179 = por %p177, %p178
      %p181 = scmp.ne.s32.totalorder %s164, %s180
      %p182 = scmp.eq.s32.totalorder %s20, 0
      %p183 = por %p181, %p182
      %p184 = scmp.le.s32.totalorder 1, %s14
      %p185 = scmp.lt.s32.totalorder %s14, 9
      %p186 = pnand %p184, %p185
      %p187 = pneg %p186
      // Predicated region
      $region9: #{_lambda_.3} parent=5 // pred_check
        _
      $region10: #{_lambda_.3} parent=5 // pred_check_branch
        %189 = sbr.rel (%p186) target = $region12
      $region11: #{_lambda_.3} parent=5 // pred_region
        %s190 = ssub.s32 %s14, 1
        // Predicated region
        $region13: #{_lambda_.3} parent=11 // pred_check
          %p191 = pneg %p127
        $region14: #{_lambda_.3} parent=11 // pred_check_branch
          %193 = sbr.rel (%p191) target = $region16
        $region15: #{_lambda_.3} parent=11 // pred_region
          _
        $region16: #{_lambda_.3} parent=11 // pred_fallthru
          _
        // Predicated region
        $region17: #{_lambda_.3} parent=11 // pred_check
          %p194 = pneg %p148
        $region18: #{_lambda_.3} parent=11 // pred_check_branch
          %196 = sbr.rel (%p194) target = $region20
        $region19: #{_lambda_.3} parent=11 // pred_region
          _
        $region20: #{_lambda_.3} parent=11 // pred_fallthru
          _
      $region12: #{_lambda_.3} parent=5 // pred_fallthru
        _
      %p197 = scmp.lt.s32.totalorder %s14, 8
      // Predicated region
      $region21: #{_lambda_.3} parent=5 // pred_check
        %p198 = pneg %p197
      $region22: #{_lambda_.3} parent=5 // pred_check_branch
        %200 = sbr.rel (%p198) target = $region24
      $region23: #{_lambda_.3} parent=5 // pred_region
        // Predicated region
        $region25: #{_lambda_.3} parent=23 // pred_check
          %p201 = pneg %p48
        $region26: #{_lambda_.3} parent=23 // pred_check_branch
          %203 = sbr.rel (%p201) target = $region28
        $region27: #{_lambda_.3} parent=23 // pred_region
          %s204 = smul.u32 4, %s22
          %p205 = scmp.lt.s32.totalorder %s21, 1
          %s206 = scalar_select %p205, %s21, 1
          %p207 = scmp.lt.s32.totalorder %s204, 15
          %s208 = scalar_select %p207, %s204, 15
          %s209 = smul.addr %s206, 16
          %s210 = sadd.s32 %s208, %s209
          %s211 = smul.addr %s210, 8
          %s212 = scalar_lea.vmem %s0, %s211
          %s213 = smul.u32 4, %s22
        $region28: #{_lambda_.3} parent=23 // pred_fallthru
          _
        // Predicated region
        $region29: #{_lambda_.3} parent=23 // pred_check
          %p214 = pneg %p74
        $region30: #{_lambda_.3} parent=23 // pred_check_branch
          %216 = sbr.rel (%p214) target = $region32
        $region31: #{_lambda_.3} parent=23 // pred_region
          %p217 = scmp.lt.s32.totalorder %s21, 1
          %s218 = scalar_select %p217, %s21, 1
          %s219 = scalar_lea.vmem %s1, %s218
        $region32: #{_lambda_.3} parent=23 // pred_fallthru
          _
        // Predicated region
        $region33: #{_lambda_.3} parent=23 // pred_check
          %p220 = pneg %p100
        $region34: #{_lambda_.3} parent=23 // pred_check_branch
          %222 = sbr.rel (%p220) target = $region36
        $region35: #{_lambda_.3} parent=23 // pred_region
          %p223 = scmp.lt.s32.totalorder %s21, 1
          %s224 = scalar_select %p223, %s21, 1
          %s225 = scalar_lea.vmem %s2, %s224
        $region36: #{_lambda_.3} parent=23 // pred_fallthru
          _
      $region24: #{_lambda_.3} parent=5 // pred_fallthru
        _
      %p226 = scmp.le.s32.totalorder 1, %s14
      %p227 = scmp.lt.s32.totalorder %s14, 9
      %p228 = pnand %p226, %p227
      %p229 = pneg %p228
      // Predicated region
      $region37: #{_lambda_.3} parent=5 // pred_check
        _
      $region38: #{_lambda_.3} parent=5 // pred_check_branch
        %231 = sbr.rel (%p228) target = $region40
      $region39: #{_lambda_.3} parent=5 // pred_region
        %s232 = ssub.s32 %s14, 1
        %s233 = smul.u32 4, %s24
        %p234 = scmp.lt.s32.totalorder %s23, 1
        %s235 = scalar_select %p234, %s23, 1
        %p236 = scmp.lt.s32.totalorder %s233, 15
        %s237 = scalar_select %p236, %s233, 15
        %s238 = smul.addr %s235, 16
        %s239 = sadd.s32 %s237, %s238
        %s240 = smul.addr %s239, 8
        %s241 = scalar_lea.vmem %s0, %s240
        %p242 = pneg %p54
        %p243 = pneg %p51
        %p244 = scmp.lt.s32.totalorder %s23, 1
        %s245 = scalar_select %p244, %s23, 1
        %s246 = scalar_lea.vmem %s1, %s245
        %p247 = pneg %p80
        %p248 = pneg %p77
        %p249 = scmp.lt.s32.totalorder %s23, 1
        %s250 = scalar_select %p249, %s23, 1
        %s251 = scalar_lea.vmem %s2, %s250
        %p252 = pneg %p106
        %p253 = pneg %p103
        %p254 = pneg %p127
        %p255 = pneg %p124
        %p256 = pneg %p148
        %p257 = pneg %p145
        %p258 = pneg %p176
        %p259 = pneg %p173
        %s260 = sand.u32 %s163, 1
        %s261 = scalar_lea.sflag [#allocation3], %s260
        %s262 = sand.u32 %s163, 1
        %s263 = smul.addr %s262, 32
        %s264 = scalar_lea.vmem [#allocation2], %s263
        %s265 = smul.u32 4, %s24
        %p266 = scmp.lt.s32.totalorder %s23, 1
        %s267 = scalar_select %p266, %s23, 1
        %p268 = scmp.lt.s32.totalorder %s265, 15
        %s269 = scalar_select %p268, %s265, 15
        %s270 = smul.addr %s267, 16
        %s271 = sadd.s32 %s269, %s270
        %s272 = smul.addr %s271, 8
        %s273 = scalar_lea.vmem %s0, %s272
        %s274 = smul.u32 4, %s24
        %p275 = scmp.lt.s32.totalorder %s23, 1
        %s276 = scalar_select %p275, %s23, 1
        %s277 = scalar_lea.vmem %s1, %s276
        %p278 = scmp.lt.s32.totalorder %s23, 1
        %s279 = scalar_select %p278, %s23, 1
        %s280 = scalar_lea.vmem %s2, %s279
        %s281 = smul.u32 4, %s24
        %v283 = vld [vmem:[%s273] sm:$0xff]
        %v284 = vld [vmem:[%s273 + $0x8] sm:$0xff]
        %v285 = vld [vmem:[%s273 + $0x10] sm:$0xff]
        %v286 = vld [vmem:[%s273 + $0x18] sm:$0xff]
        %v287 = vld [vmem:[%s277] sm:$0x1]
        %v289 = vlaneseq
        %v290 = vshrl.u32 %v289, 7
        %v291 = vsub.s32 0, %v290
        %v292 = vrot.slane %v287, %v291
        %v294 = vmul.f32 %v283, %v292
        %v295 = vmul.f32 %v284, %v292
        %v296 = vmul.f32 %v285, %v292
        %v297 = vmul.f32 %v286, %v292
        %v298 = vld [vmem:[%s280] sm:$0x1]
        %v300 = vlaneseq
        %v301 = vshrl.u32 %v300, 7
        %v302 = vsub.s32 0, %v301
        %v303 = vrot.slane %v298, %v302
        %v305 = vadd.f32 %v294, %v303
        %v306 = vadd.f32 %v295, %v303
        %v307 = vadd.f32 %v296, %v303
        %v308 = vadd.f32 %v297, %v303
        %v309 = vmax.f32 %v305, 0.0
        %v310 = vmax.f32 %v306, 0.0
        %v311 = vmax.f32 %v307, 0.0
        %v312 = vmax.f32 %v308, 0.0
        %v313 = vpack.c.bf16 %v310, %v309
        %v314 = vpack.c.bf16 %v312, %v311
        %v315 = vld [vmem:[%s3] sm:$0xf]
        %v316 = vld [vmem:[%s3 + $0x4] sm:$0xf]
        %v317 = vld [vmem:[%s3 + $0x8] sm:$0xf]
        %v318 = vld [vmem:[%s3 + $0xc] sm:$0xf]
        %v319 = vld [vmem:[%s3 + $0x10] sm:$0xf]
        %v320 = vld [vmem:[%s3 + $0x14] sm:$0xf]
        %v321 = vld [vmem:[%s3 + $0x18] sm:$0xf]
        %v322 = vld [vmem:[%s3 + $0x1c] sm:$0xf]
        %v323 = vld [vmem:[%s3 + $0x20] sm:$0xf]
        %v324 = vld [vmem:[%s3 + $0x24] sm:$0xf]
        %v325 = vld [vmem:[%s3 + $0x28] sm:$0xf]
        %v326 = vld [vmem:[%s3 + $0x2c] sm:$0xf]
        %v327 = vld [vmem:[%s3 + $0x30] sm:$0xf]
        %v328 = vld [vmem:[%s3 + $0x34] sm:$0xf]
        %v329 = vld [vmem:[%s3 + $0x38] sm:$0xf]
        %v330 = vld [vmem:[%s3 + $0x3c] sm:$0xf]
        %v331 = vld [vmem:[%s4] sm:$0x1]
        %v333 = vlaneseq
        %v334 = vshrl.u32 %v333, 7
        %v335 = vsub.s32 0, %v334
        %v336 = vrot.slane %v331, %v335
        %v354 = vunpack.c.l.b16 %v315
        %v355 = vunpack.c.l.b16 %v316
        %v356 = vunpack.c.l.b16 %v317
        %v357 = vunpack.c.l.b16 %v318
        %v358 = vunpack.c.l.b16 %v319
        %v359 = vunpack.c.l.b16 %v320
        %v360 = vunpack.c.l.b16 %v321
        %v361 = vunpack.c.l.b16 %v322
        %v362 = vunpack.c.l.b16 %v323
        %v363 = vunpack.c.l.b16 %v324
        %v364 = vunpack.c.l.b16 %v325
        %v365 = vunpack.c.l.b16 %v326
        %v366 = vunpack.c.l.b16 %v327
        %v367 = vunpack.c.l.b16 %v328
        %v368 = vunpack.c.l.b16 %v329
        %v369 = vunpack.c.l.b16 %v330
        %v370 = vpack.c.b16 %v355, %v354
        %v371 = vpack.c.b16 %v357, %v356
        %v372 = vpack.c.b16 %v359, %v358
        %v373 = vpack.c.b16 %v361, %v360
        %v374 = vpack.c.b16 %v363, %v362
        %v375 = vpack.c.b16 %v365, %v364
        %v376 = vpack.c.b16 %v367, %v366
        %v377 = vpack.c.b16 %v369, %v368
        %386 = vmatprep.subr.bf16.mxu0 0
        %387 = vmatpush1.bf16.msra.mxu0 %v377
        %388 = vmatprep.subr.bf16.mxu0 0
        %389 = vmatpush1.bf16.msra.mxu0 %v376
        %390 = vmatprep.subr.bf16.mxu0 0
        %391 = vmatpush1.bf16.msra.mxu0 %v375
        %392 = vmatprep.subr.bf16.mxu0 0
        %393 = vmatpush1.bf16.msra.mxu0 %v374
        %394 = vmatprep.subr.bf16.mxu0 0
        %395 = vmatpush1.bf16.msra.mxu0 %v373
        %396 = vmatprep.subr.bf16.mxu0 0
        %397 = vmatpush1.bf16.msra.mxu0 %v372
        %398 = vmatprep.subr.bf16.mxu0 0
        %399 = vmatpush1.bf16.msra.mxu0 %v371
        %400 = vmatprep.subr.bf16.mxu0 0
        %401 = vmatpush1.bf16.msra.mxu0 %v370
        %402 = vmatprep.subr.bf16.mxu0 0
        %403 = vmatpush2.bf16.msra.mxu0 0
        %404 = vmatprep.subr.bf16.mxu0 0
        %405 = vmatpush2.bf16.msra.mxu0 0
        %406 = vmatprep.subr.bf16.mxu0 0
        %407 = vmatpush2.bf16.msra.mxu0 0
        %408 = vmatprep.subr.bf16.mxu0 0
        %409 = vmatpush2.bf16.msra.mxu0 0
        %410 = vmatprep.subr.bf16.mxu0 0
        %411 = vmatpush2.bf16.msra.mxu0 0
        %412 = vmatprep.subr.bf16.mxu0 0
        %413 = vmatpush2.bf16.msra.mxu0 0
        %414 = vmatprep.subr.bf16.mxu0 0
        %415 = vmatpush2.bf16.msra.mxu0 0
        %416 = vmatprep.subr.bf16.mxu0 0
        %417 = vmatpush2.bf16.msra.mxu0 0
        %418 = vmatprep.mubr.bf16.mxu0 0
        %419 = vmatmul.mubr.bf16.gmra.mxu0 %v313
        %v420 = vpop.f32.mrf.mxu0
        %v421 = vadd.f32 %v336, %v420
        %v422 = vpop.f32.mrf.mxu0
        %v423 = vpop.f32.mrf.mxu0
        %v424 = vadd.f32 %v336, %v423
        %v425 = vpop.f32.mrf.mxu0
        %426 = vmatprep.mubr.bf16.mxu0 0
        %427 = vmatmul.mubr.bf16.gmra.mxu0 %v314
        %v428 = vpop.f32.mrf.mxu0
        %v429 = vadd.f32 %v336, %v428
        %v430 = vpop.f32.mrf.mxu0
        %v431 = vpop.f32.mrf.mxu0
        %v432 = vadd.f32 %v336, %v431
        %v433 = vpop.f32.mrf.mxu0
        %434 = vdwg.mxu0
        %435 = vst [vmem:[%s264] sm:$0xff] %v421
        %436 = vst [vmem:[%s264 + $0x8] sm:$0xff] %v424
        %437 = vst [vmem:[%s264 + $0x10] sm:$0xff] %v429
        %438 = vst [vmem:[%s264 + $0x18] sm:$0xff] %v432
        %s439 = sand.u32 %s163, 1
        %s440 = scalar_lea.sflag [#allocation3], %s439
        %s441 = sand.u32 %s163, 1
        %s442 = smul.addr %s441, 32
        %s443 = scalar_lea.vmem [#allocation2], %s442
        // Predicated region
        $region41: #{_lambda_.3} parent=39 // pred_check
          %p444 = pneg %p173
        $region42: #{_lambda_.3} parent=39 // pred_check_branch
          %446 = sbr.rel (%p444) target = $region44
        $region43: #{_lambda_.3} parent=39 // pred_region
          %s447 = smul.u32 4, %s24
          %s449 = ssub.s32 512, 512
          %450 = vsyncadd %s440, %s449
          %s451 = smul.addr %s23, 16
          %s452 = sadd.s32 %s447, %s451
          %s453 = smul.addr %s452, 128
          %s454 = scalar_lea.hbm %s5, %s453
          %s455 = sshll.u32 %s443, 4
          %s456 = int_to_ptr.vmem [resolvable:$true] %s455
          %461 = dma.vmem_to_hbm [thread:$0]  %s456, 512, %s454, %s440, 128, 128, 8
        $region44: #{_lambda_.3} parent=39 // pred_fallthru
          _
      $region40: #{_lambda_.3} parent=5 // pred_fallthru
        _
      %p462 = scmp.le.s32.totalorder 2, %s14
      // Predicated region
      $region45: #{_lambda_.3} parent=5 // pred_check
        %p463 = pneg %p462
      $region46: #{_lambda_.3} parent=5 // pred_check_branch
        %465 = sbr.rel (%p463) target = $region48
      $region47: #{_lambda_.3} parent=5 // pred_region
        %s466 = ssub.s32 %s14, 2
        // Predicated region
        $region49: #{_lambda_.3} parent=47 // pred_check
          %p467 = pneg %p179
        $region50: #{_lambda_.3} parent=47 // pred_check_branch
          %469 = sbr.rel (%p467) target = $region52
        $region51: #{_lambda_.3} parent=47 // pred_region
          %s470 = sand.u32 %s164, 1
          %s471 = scalar_lea.sflag [#allocation3], %s470
          %s472 = sand.u32 %s164, 1
          %s473 = smul.addr %s472, 32
          %s474 = scalar_lea.vmem [#allocation2], %s473
          %475 = dma.done %s471, 512
        $region52: #{_lambda_.3} parent=47 // pred_fallthru
          _
      $region48: #{_lambda_.3} parent=5 // pred_fallthru
        _
    $region6: #{_lambda_.3} parent=1 // loop_footer
      %s18 = sadd.s32 1, %s14
    $region7: #{_lambda_.3} parent=1 // loop_footer_branch
      %13 = sbr.rel target = $region3
    $region8: #{_lambda_.3} parent=1 // loop_exit
      _
    %476 = vsyncpa [#allocation3], 1
    %s477 = scalar_lea.sflag [#allocation3], 1
    %478 = vsyncpa %s477, 1

// kernel: _lambda_.2
$region0: #{_lambda_.2}
  #allocation0 [shape = 'u32[]', space=smem, size = 0x4, offset = 0x4, fixed_abs, tag = 'smem constant byte address 0x4 - core index']
  #allocation1 [shape = 'u32[144,128]{1,0:T(1,128)}', space=vmem, size = 0x12000, scoped, tag = 'internal scratch']
  #allocation2 [shape = 'f32[48,128]{1,0:T(8,128)}', space=vmem, size = 0x6000, scoped, tag = 'scratch operand']
  %s0 = inlined_call_operand.hbm [shape: f32[2,128,128], index: 0, kind: input, shape index: {}, may-alias: {0,1,2}]
  %s1 = inlined_call_operand.hbm [shape: f32[2,128,128], index: 1, kind: input, shape index: {}, may-alias: {0,1,2}]
  %s2 = inlined_call_operand.hbm [shape: f32[2,128,128], index: 2, kind: input, shape index: {}, may-alias: {0,1,2}]
  %s3 = inlined_call_operand.hbm [shape: bf16[128,128], index: 3, kind: input, shape index: {}]
  %s4 = inlined_call_operand.hbm [shape: bf16[128,128], index: 4, kind: input, shape index: {}]
  %s5 = inlined_call_operand.vmem [shape: f32[1,128], index: 5, kind: input, shape index: {}]
  %s6 = inlined_call_operand.vmem [shape: f32[1,128], index: 6, kind: input, shape index: {}]
  %s7 = inlined_call_operand.hbm [shape: f32[15,128], index: 7, kind: input, shape index: {}]
  %s8 = inlined_call_operand.vmem [shape: f32[1,128], index: 8, kind: input, shape index: {}]
  %s9 = inlined_call_operand.vmem [shape: f32[2,128,128], index: 9, kind: output, shape index: {0}]
  %s10 = inlined_call_operand.vmem [shape: f32[2,1,128], index: 10, kind: output, shape index: {1}]
  %s11 = inlined_call_operand.vmem [shape: f32[2,1,128], index: 11, kind: output, shape index: {2}]
  %12 = xla_tuple %s9, %s10, %s11
  %s13 = sld [smem:[#allocation0]]
  $region113: #{_lambda_.2} parent=0
    _
  %s15 = ssub.s32 1, %s13
  %s16 = scalar_select 0, %s15, %s13
  $region1: #{_lambda_.2} parent=0
    #allocation3 [shape = 'u8[8192]{0}', space=vmem, size = 0x2000, scoped, tag = 'input window, operand 0']
    #allocation4 [shape = 's32[2]{0}', space=sflag, size = 0x8, scoped, tag = 'scoped memory for _lambda_.2']
    #allocation5 [shape = 'u8[32768]{0}', space=vmem, size = 0x8000, scoped, tag = 'input window, operand 1']
    #allocation6 [shape = 's32[2]{0}', space=sflag, size = 0x8, scoped, tag = 'scoped memory for _lambda_.2']
    #allocation7 [shape = 'u8[8192]{0}', space=vmem, size = 0x2000, scoped, tag = 'input window, operand 2']
    #allocation8 [shape = 'u8[32768]{0}', space=vmem, size = 0x8000, scoped, tag = 'input window, operand 3, single buffered']
    #allocation9 [shape = 's32[1]{0}', space=sflag, size = 0x4, scoped, tag = 'scoped memory for _lambda_.2']
    #allocation10 [shape = 'u8[32768]{0}', space=vmem, size = 0x8000, scoped, tag = 'input window, operand 4, single buffered']
    #allocation11 [shape = 'u8[8192]{0}', space=vmem, size = 0x2000, scoped, tag = 'input window, operand 7, single buffered']
    #allocation12 [shape = 's32[1]{0}', space=sflag, size = 0x4, scoped, tag = 'scoped memory for _lambda_.2']
    %17 = vsyncpa [#allocation4], 0
    %s18 = scalar_lea.sflag [#allocation4], 1
    %19 = vsyncpa %s18, 0
    %20 = vsyncpa [#allocation6], 0
    %s21 = scalar_lea.sflag [#allocation6], 1
    %22 = vsyncpa %s21, 0
    %23 = vsyncpa [#allocation9], 0
    %24 = vsyncpa [#allocation12], 0
    loop: start=0, step=1, limit=10
    $region2: #{_lambda_.2} parent=1 // loop_pre_header
      _
    $region3: #{_lambda_.2} parent=1 // loop_header
      %s26 = sphi 0, %s30
      %p27 = scmp.ge.s32.totalorder %s26, 10
      %s33 = sphi 0, %s45
      %s34 = sphi 0, %s41
      %s35 = sphi 0, %s33
      %s36 = sphi 0, %s34
      %s37 = sphi 0, %s35
      %s38 = sphi 0, %s36
      %s58 = sphi 0, %s60
      %s61 = sphi 0, %s58
      %s62 = sphi 0, %s61
      %s78 = sphi 0, %s62
      %s86 = sphi 0, %s88
      %s89 = sphi 0, %s86
      %s90 = sphi 0, %s89
      %s106 = sphi 0, %s90
      %s122 = sphi 0, %s124
      %s125 = sphi 0, %s122
      %s126 = sphi 0, %s125
      %s142 = sphi 0, %s126
      %s146 = sphi 0, %s146
      %s148 = sphi 0, %s146
      %s149 = sphi 0, %s148
      %s163 = sphi 0, %s149
      %s167 = sphi 0, %s167
      %s169 = sphi 0, %s167
      %s170 = sphi 0, %s169
      %s184 = sphi 0, %s170
      %s188 = sphi 0, %s188
      %s190 = sphi 0, %s188
      %s191 = sphi 0, %s190
      %s205 = sphi 0, %s191
      %s209 = sphi 0, %s209
      %s211 = sphi 0, %s209
      %s212 = sphi 0, %s211
      %s226 = sphi 0, %s212
      %s230 = sphi 0, %s230
      %s232 = sphi 0, %s230
      %s233 = sphi 0, %s232
      %s247 = sphi 0, %s233
      %s251 = sphi 0, %s251
      %s253 = sphi 0, %s251
      %s254 = sphi 0, %s253
      %s268 = sphi 0, %s254
      %s276 = sphi 0, %s278
      %s279 = sphi 0, %s276
      %s280 = sphi 0, %s279
      %s296 = sphi 0, %s280
      %s302 = sphi 0, %s304
      %s305 = sphi 0, %s302
      %s306 = sphi 0, %s305
      %s322 = sphi 0, %s306
      %s328 = sphi 0, %s330
      %s331 = sphi 0, %s328
      %s332 = sphi 0, %s331
      %s348 = sphi 0, %s332
    $region4: #{_lambda_.2} parent=1 // loop_header_branch
      %29 = sbr.rel (%p27) target = $region8
    $region5: #{_lambda_.2} parent=1 // loop_body
      %s31 = ssub.s32 %s26, 1
      %s32 = ssub.s32 %s26, 2
      %s39 = sadd.s32 1, %s34
      %p40 = scmp.ge.s32.totalorder %s39, 4
      %s41 = scalar_select %p40, 0, %s39
      %s42 = sadd.s32 1, %s33
      %s43 = scalar_select %p40, %s42, %s33
      %p44 = scmp.ge.s32.totalorder %s43, 2
      %s45 = scalar_select %p44, 0, %s43
      %s46 = smul.u32 %s34, 4
      %s47 = ssub.s32 %s46, 1
      %p48 = scmp.gt.s32.totalorder %s47, 0
      %s49 = scalar_select %p48, %s47, 0
      %s50 = smul.u32 %s41, 4
      %s51 = ssub.s32 %s50, 1
      %p52 = scmp.gt.s32.totalorder %s51, 0
      %s53 = scalar_select %p52, %s51, 0
      %s54 = ssub.s32 %s33, %s45
      %s55 = ssub.s32 %s49, %s53
      %s56 = sor.u32 %s54, %s55
      %p57 = scmp.eq.s32.totalorder %s56, 0
      %s59 = sadd.s32 %s58, 1
      %s60 = scalar_select %p57, %s58, %s59
      %p63 = pneg %p57
      %p64 = scmp.eq.s32.totalorder %s26, 7
      %p65 = por %p63, %p64
      %p66 = scmp.ne.s32.totalorder %s58, %s61
      %p67 = scmp.eq.s32.totalorder %s26, 0
      %p68 = por %p66, %p67
      %p69 = scmp.ne.s32.totalorder %s58, %s61
      %p70 = scmp.eq.s32.totalorder %s31, 7
      %p71 = por %p69, %p70
      %p72 = scmp.ne.s32.totalorder %s61, %s62
      %p73 = scmp.eq.s32.totalorder %s31, 0
      %p74 = por %p72, %p73
      %p75 = scmp.ne.s32.totalorder %s61, %s62
      %p76 = scmp.eq.s32.totalorder %s32, 7
      %p77 = por %p75, %p76
      %p79 = scmp.ne.s32.totalorder %s62, %s78
      %p80 = scmp.eq.s32.totalorder %s32, 0
      %p81 = por %p79, %p80
      %s82 = ssub.s32 %s33, %s45
      %s83 = ssub.s32 %s34, %s41
      %s84 = sor.u32 %s82, %s83
      %p85 = scmp.eq.s32.totalorder %s84, 0
      %s87 = sadd.s32 %s86, 1
      %s88 = scalar_select %p85, %s86, %s87
      %p91 = pneg %p85
      %p92 = scmp.eq.s32.totalorder %s26, 7
      %p93 = por %p91, %p92
      %p94 = scmp.ne.s32.totalorder %s86, %s89
      %p95 = scmp.eq.s32.totalorder %s26, 0
      %p96 = por %p94, %p95
      %p97 = scmp.ne.s32.totalorder %s86, %s89
      %p98 = scmp.eq.s32.totalorder %s31, 7
      %p99 = por %p97, %p98
      %p100 = scmp.ne.s32.totalorder %s89, %s90
      %p101 = scmp.eq.s32.totalorder %s31, 0
      %p102 = por %p100, %p101
      %p103 = scmp.ne.s32.totalorder %s89, %s90
      %p104 = scmp.eq.s32.totalorder %s32, 7
      %p105 = por %p103, %p104
      %p107 = scmp.ne.s32.totalorder %s90, %s106
      %p108 = scmp.eq.s32.totalorder %s32, 0
      %p109 = por %p107, %p108
      %s110 = sadd.s32 %s34, 1
      %s111 = smul.u32 %s110, 4
      %p112 = scmp.lt.s32.totalorder %s111, 15
      %s113 = scalar_select %p112, %s111, 15
      %s114 = sadd.s32 %s41, 1
      %s115 = smul.u32 %s114, 4
      %p116 = scmp.lt.s32.totalorder %s115, 15
      %s117 = scalar_select %p116, %s115, 15
      %s118 = ssub.s32 %s33, %s45
      %s119 = ssub.s32 %s113, %s117
      %s120 = sor.u32 %s118, %s119
      %p121 = scmp.eq.s32.totalorder %s120, 0
      %s123 = sadd.s32 %s122, 1
      %s124 = scalar_select %p121, %s122, %s123
      %p127 = pneg %p121
      %p128 = scmp.eq.s32.totalorder %s26, 7
      %p129 = por %p127, %p128
      %p130 = scmp.ne.s32.totalorder %s122, %s125
      %p131 = scmp.eq.s32.totalorder %s26, 0
      %p132 = por %p130, %p131
      %p133 = scmp.ne.s32.totalorder %s122, %s125
      %p134 = scmp.eq.s32.totalorder %s31, 7
      %p135 = por %p133, %p134
      %p136 = scmp.ne.s32.totalorder %s125, %s126
      %p137 = scmp.eq.s32.totalorder %s31, 0
      %p138 = por %p136, %p137
      %p139 = scmp.ne.s32.totalorder %s125, %s126
      %p140 = scmp.eq.s32.totalorder %s32, 7
      %p141 = por %p139, %p140
      %p143 = scmp.ne.s32.totalorder %s126, %s142
      %p144 = scmp.eq.s32.totalorder %s32, 0
      %p145 = por %p143, %p144
      %s147 = sadd.s32 %s146, 1
      %p150 = scmp.eq.s32.totalorder %s26, 7
      %p151 = scmp.ne.s32.totalorder %s146, %s148
      %p152 = scmp.eq.s32.totalorder %s26, 0
      %p153 = por %p151, %p152
      %p154 = scmp.ne.s32.totalorder %s146, %s148
      %p155 = scmp.eq.s32.totalorder %s31, 7
      %p156 = por %p154, %p155
      %p157 = scmp.ne.s32.totalorder %s148, %s149
      %p158 = scmp.eq.s32.totalorder %s31, 0
      %p159 = por %p157, %p158
      %p160 = scmp.ne.s32.totalorder %s148, %s149
      %p161 = scmp.eq.s32.totalorder %s32, 7
      %p162 = por %p160, %p161
      %p164 = scmp.ne.s32.totalorder %s149, %s163
      %p165 = scmp.eq.s32.totalorder %s32, 0
      %p166 = por %p164, %p165
      %s168 = sadd.s32 %s167, 1
      %p171 = scmp.eq.s32.totalorder %s26, 7
      %p172 = scmp.ne.s32.totalorder %s167, %s169
      %p173 = scmp.eq.s32.totalorder %s26, 0
      %p174 = por %p172, %p173
      %p175 = scmp.ne.s32.totalorder %s167, %s169
      %p176 = scmp.eq.s32.totalorder %s31, 7
      %p177 = por %p175, %p176
      %p178 = scmp.ne.s32.totalorder %s169, %s170
      %p179 = scmp.eq.s32.totalorder %s31, 0
      %p180 = por %p178, %p179
      %p181 = scmp.ne.s32.totalorder %s169, %s170
      %p182 = scmp.eq.s32.totalorder %s32, 7
      %p183 = por %p181, %p182
      %p185 = scmp.ne.s32.totalorder %s170, %s184
      %p186 = scmp.eq.s32.totalorder %s32, 0
      %p187 = por %p185, %p186
      %s189 = sadd.s32 %s188, 1
      %p192 = scmp.eq.s32.totalorder %s26, 7
      %p193 = scmp.ne.s32.totalorder %s188, %s190
      %p194 = scmp.eq.s32.totalorder %s26, 0
      %p195 = por %p193, %p194
      %p196 = scmp.ne.s32.totalorder %s188, %s190
      %p197 = scmp.eq.s32.totalorder %s31, 7
      %p198 = por %p196, %p197
      %p199 = scmp.ne.s32.totalorder %s190, %s191
      %p200 = scmp.eq.s32.totalorder %s31, 0
      %p201 = por %p199, %p200
      %p202 = scmp.ne.s32.totalorder %s190, %s191
      %p203 = scmp.eq.s32.totalorder %s32, 7
      %p204 = por %p202, %p203
      %p206 = scmp.ne.s32.totalorder %s191, %s205
      %p207 = scmp.eq.s32.totalorder %s32, 0
      %p208 = por %p206, %p207
      %s210 = sadd.s32 %s209, 1
      %p213 = scmp.eq.s32.totalorder %s26, 7
      %p214 = scmp.ne.s32.totalorder %s209, %s211
      %p215 = scmp.eq.s32.totalorder %s26, 0
      %p216 = por %p214, %p215
      %p217 = scmp.ne.s32.totalorder %s209, %s211
      %p218 = scmp.eq.s32.totalorder %s31, 7
      %p219 = por %p217, %p218
      %p220 = scmp.ne.s32.totalorder %s211, %s212
      %p221 = scmp.eq.s32.totalorder %s31, 0
      %p222 = por %p220, %p221
      %p223 = scmp.ne.s32.totalorder %s211, %s212
      %p224 = scmp.eq.s32.totalorder %s32, 7
      %p225 = por %p223, %p224
      %p227 = scmp.ne.s32.totalorder %s212, %s226
      %p228 = scmp.eq.s32.totalorder %s32, 0
      %p229 = por %p227, %p228
      %s231 = sadd.s32 %s230, 1
      %p234 = scmp.eq.s32.totalorder %s26, 7
      %p235 = scmp.ne.s32.totalorder %s230, %s232
      %p236 = scmp.eq.s32.totalorder %s26, 0
      %p237 = por %p235, %p236
      %p238 = scmp.ne.s32.totalorder %s230, %s232
      %p239 = scmp.eq.s32.totalorder %s31, 7
      %p240 = por %p238, %p239
      %p241 = scmp.ne.s32.totalorder %s232, %s233
      %p242 = scmp.eq.s32.totalorder %s31, 0
      %p243 = por %p241, %p242
      %p244 = scmp.ne.s32.totalorder %s232, %s233
      %p245 = scmp.eq.s32.totalorder %s32, 7
      %p246 = por %p244, %p245
      %p248 = scmp.ne.s32.totalorder %s233, %s247
      %p249 = scmp.eq.s32.totalorder %s32, 0
      %p250 = por %p248, %p249
      %s252 = sadd.s32 %s251, 1
      %p255 = scmp.eq.s32.totalorder %s26, 7
      %p256 = scmp.ne.s32.totalorder %s251, %s253
      %p257 = scmp.eq.s32.totalorder %s26, 0
      %p258 = por %p256, %p257
      %p259 = scmp.ne.s32.totalorder %s251, %s253
      %p260 = scmp.eq.s32.totalorder %s31, 7
      %p261 = por %p259, %p260
      %p262 = scmp.ne.s32.totalorder %s253, %s254
      %p263 = scmp.eq.s32.totalorder %s31, 0
      %p264 = por %p262, %p263
      %p265 = scmp.ne.s32.totalorder %s253, %s254
      %p266 = scmp.eq.s32.totalorder %s32, 7
      %p267 = por %p265, %p266
      %p269 = scmp.ne.s32.totalorder %s254, %s268
      %p270 = scmp.eq.s32.totalorder %s32, 0
      %p271 = por %p269, %p270
      %s272 = ssub.s32 %s33, %s45
      %s273 = ssub.s32 %s34, %s41
      %s274 = sor.u32 %s272, %s273
      %p275 = scmp.eq.s32.totalorder %s274, 0
      %s277 = sadd.s32 %s276, 1
      %s278 = scalar_select %p275, %s276, %s277
      %p281 = pneg %p275
      %p282 = scmp.eq.s32.totalorder %s26, 7
      %p283 = por %p281, %p282
      %p284 = scmp.ne.s32.totalorder %s276, %s279
      %p285 = scmp.eq.s32.totalorder %s26, 0
      %p286 = por %p284, %p285
      %p287 = scmp.ne.s32.totalorder %s276, %s279
      %p288 = scmp.eq.s32.totalorder %s31, 7
      %p289 = por %p287, %p288
      %p290 = scmp.ne.s32.totalorder %s279, %s280
      %p291 = scmp.eq.s32.totalorder %s31, 0
      %p292 = por %p290, %p291
      %p293 = scmp.ne.s32.totalorder %s279, %s280
      %p294 = scmp.eq.s32.totalorder %s32, 7
      %p295 = por %p293, %p294
      %p297 = scmp.ne.s32.totalorder %s280, %s296
      %p298 = scmp.eq.s32.totalorder %s32, 0
      %p299 = por %p297, %p298
      %s300 = ssub.s32 %s33, %s45
      %p301 = scmp.eq.s32.totalorder %s300, 0
      %s303 = sadd.s32 %s302, 1
      %s304 = scalar_select %p301, %s302, %s303
      %p307 = pneg %p301
      %p308 = scmp.eq.s32.totalorder %s26, 7
      %p309 = por %p307, %p308
      %p310 = scmp.ne.s32.totalorder %s302, %s305
      %p311 = scmp.eq.s32.totalorder %s26, 0
      %p312 = por %p310, %p311
      %p313 = scmp.ne.s32.totalorder %s302, %s305
      %p314 = scmp.eq.s32.totalorder %s31, 7
      %p315 = por %p313, %p314
      %p316 = scmp.ne.s32.totalorder %s305, %s306
      %p317 = scmp.eq.s32.totalorder %s31, 0
      %p318 = por %p316, %p317
      %p319 = scmp.ne.s32.totalorder %s305, %s306
      %p320 = scmp.eq.s32.totalorder %s32, 7
      %p321 = por %p319, %p320
      %p323 = scmp.ne.s32.totalorder %s306, %s322
      %p324 = scmp.eq.s32.totalorder %s32, 0
      %p325 = por %p323, %p324
      %s326 = ssub.s32 %s33, %s45
      %p327 = scmp.eq.s32.totalorder %s326, 0
      %s329 = sadd.s32 %s328, 1
      %s330 = scalar_select %p327, %s328, %s329
      %p333 = pneg %p327
      %p334 = scmp.eq.s32.totalorder %s26, 7
      %p335 = por %p333, %p334
      %p336 = scmp.ne.s32.totalorder %s328, %s331
      %p337 = scmp.eq.s32.totalorder %s26, 0
      %p338 = por %p336, %p337
      %p339 = scmp.ne.s32.totalorder %s328, %s331
      %p340 = scmp.eq.s32.totalorder %s31, 7
      %p341 = por %p339, %p340
      %p342 = scmp.ne.s32.totalorder %s331, %s332
      %p343 = scmp.eq.s32.totalorder %s31, 0
      %p344 = por %p342, %p343
      %p345 = scmp.ne.s32.totalorder %s331, %s332
      %p346 = scmp.eq.s32.totalorder %s32, 7
      %p347 = por %p345, %p346
      %p349 = scmp.ne.s32.totalorder %s332, %s348
      %p350 = scmp.eq.s32.totalorder %s32, 0
      %p351 = por %p349, %p350
      %p352 = scmp.le.s32.totalorder 1, %s26
      %p353 = scmp.lt.s32.totalorder %s26, 9
      %p354 = pnand %p352, %p353
      %p355 = pneg %p354
      // Predicated region
      $region9: #{_lambda_.2} parent=5 // pred_check
        _
      $region10: #{_lambda_.2} parent=5 // pred_check_branch
        %357 = sbr.rel (%p354) target = $region12
      $region11: #{_lambda_.2} parent=5 // pred_region
        %s358 = ssub.s32 %s26, 1
        // Predicated region
        $region13: #{_lambda_.2} parent=11 // pred_check
          %p359 = pneg %p159
        $region14: #{_lambda_.2} parent=11 // pred_check_branch
          %361 = sbr.rel (%p359) target = $region16
        $region15: #{_lambda_.2} parent=11 // pred_region
          %s363 = ssub.s32 1024, 1024
          %364 = vsyncadd [#allocation9], %s363
          %s365 = sshll.u32 [#allocation8], 4
          %s366 = int_to_ptr.vmem [resolvable:$true] %s365
          %371 = dma.hbm_to_vmem [thread:$0]  %s3, 1024, %s366, [#allocation9], 64, 64, 4
        $region16: #{_lambda_.2} parent=11 // pred_fallthru
          _
        // Predicated region
        $region17: #{_lambda_.2} parent=11 // pred_check
          %p372 = pneg %p180
        $region18: #{_lambda_.2} parent=11 // pred_check_branch
          %374 = sbr.rel (%p372) target = $region20
        $region19: #{_lambda_.2} parent=11 // pred_region
          %s376 = ssub.s32 1024, 1024
          %377 = vsyncadd [#allocation9], %s376
          %s378 = sshll.u32 [#allocation10], 4
          %s379 = int_to_ptr.vmem [resolvable:$true] %s378
          %384 = dma.hbm_to_vmem [thread:$0]  %s4, 1024, %s379, [#allocation9], 64, 64, 4
        $region20: #{_lambda_.2} parent=11 // pred_fallthru
          _
        // Predicated region
        $region21: #{_lambda_.2} parent=11 // pred_check
          %p385 = pneg %p201
        $region22: #{_lambda_.2} parent=11 // pred_check_branch
          %387 = sbr.rel (%p385) target = $region24
        $region23: #{_lambda_.2} parent=11 // pred_region
          _
        $region24: #{_lambda_.2} parent=11 // pred_fallthru
          _
        // Predicated region
        $region25: #{_lambda_.2} parent=11 // pred_check
          %p388 = pneg %p222
        $region26: #{_lambda_.2} parent=11 // pred_check_branch
          %390 = sbr.rel (%p388) target = $region28
        $region27: #{_lambda_.2} parent=11 // pred_region
          _
        $region28: #{_lambda_.2} parent=11 // pred_fallthru
          _
        // Predicated region
        $region29: #{_lambda_.2} parent=11 // pred_check
          %p391 = pneg %p243
        $region30: #{_lambda_.2} parent=11 // pred_check_branch
          %393 = sbr.rel (%p391) target = $region32
        $region31: #{_lambda_.2} parent=11 // pred_region
          %s395 = ssub.s32 256, 256
          %396 = vsyncadd [#allocation12], %s395
          %s397 = sshll.u32 [#allocation11], 4
          %s398 = int_to_ptr.vmem [resolvable:$true] %s397
          %403 = dma.hbm_to_vmem [thread:$0]  %s7, 256, %s398, [#allocation12], 128, 128, 8
        $region32: #{_lambda_.2} parent=11 // pred_fallthru
          _
        // Predicated region
        $region33: #{_lambda_.2} parent=11 // pred_check
          %p404 = pneg %p264
        $region34: #{_lambda_.2} parent=11 // pred_check_branch
          %406 = sbr.rel (%p404) target = $region36
        $region35: #{_lambda_.2} parent=11 // pred_region
          _
        $region36: #{_lambda_.2} parent=11 // pred_fallthru
          _
      $region12: #{_lambda_.2} parent=5 // pred_fallthru
        _
      %p407 = scmp.lt.s32.totalorder %s26, 8
      // Predicated region
      $region37: #{_lambda_.2} parent=5 // pred_check
        %p408 = pneg %p407
      $region38: #{_lambda_.2} parent=5 // pred_check_branch
        %410 = sbr.rel (%p408) target = $region40
      $region39: #{_lambda_.2} parent=5 // pred_region
        // Predicated region
        $region41: #{_lambda_.2} parent=39 // pred_check
          %p411 = pneg %p68
        $region42: #{_lambda_.2} parent=39 // pred_check_branch
          %413 = sbr.rel (%p411) target = $region44
        $region43: #{_lambda_.2} parent=39 // pred_region
          %s414 = sand.u32 %s58, 1
          %s415 = scalar_lea.sflag [#allocation4], %s414
          %s416 = sand.u32 %s58, 1
          %s417 = smul.addr %s416, 8
          %s418 = scalar_lea.vmem [#allocation3], %s417
          %s419 = smul.u32 %s34, 4
          %s420 = ssub.s32 %s419, 1
          %p421 = scmp.gt.s32.totalorder %s420, 0
          %s422 = scalar_select %p421, %s420, 0
          %s424 = ssub.s32 128, 128
          %425 = vsyncadd %s415, %s424
          %s426 = smul.addr %s33, 16
          %s427 = sadd.s32 %s422, %s426
          %s428 = smul.addr %s427, 128
          %s429 = scalar_lea.hbm %s0, %s428
          %s431 = sshll.u32 %s418, 4
          %s432 = int_to_ptr.vmem [resolvable:$true] %s431
          %434 = dma.hbm_to_vmem [thread:$0]  %s429, 128, %s432, %s415
        $region44: #{_lambda_.2} parent=39 // pred_fallthru
          _
        // Predicated region
        $region45: #{_lambda_.2} parent=39 // pred_check
          %p435 = pneg %p96
        $region46: #{_lambda_.2} parent=39 // pred_check_branch
          %437 = sbr.rel (%p435) target = $region48
        $region47: #{_lambda_.2} parent=39 // pred_region
          %s438 = sand.u32 %s26, 1
          %s439 = scalar_lea.sflag [#allocation6], %s438
          %s440 = sand.u32 %s86, 1
          %s441 = smul.addr %s440, 32
          %s442 = scalar_lea.vmem [#allocation5], %s441
          %s443 = smul.u32 4, %s34
          %s445 = ssub.s32 512, 512
          %446 = vsyncadd %s439, %s445
          %s447 = smul.addr %s33, 16
          %s448 = sadd.s32 %s443, %s447
          %s449 = smul.addr %s448, 128
          %s450 = scalar_lea.hbm %s1, %s449
          %s451 = sshll.u32 %s442, 4
          %s452 = int_to_ptr.vmem [resolvable:$true] %s451
          %457 = dma.hbm_to_vmem [thread:$0]  %s450, 512, %s452, %s439, 128, 128, 8
        $region48: #{_lambda_.2} parent=39 // pred_fallthru
          _
        // Predicated region
        $region49: #{_lambda_.2} parent=39 // pred_check
          %p458 = pneg %p132
        $region50: #{_lambda_.2} parent=39 // pred_check_branch
          %460 = sbr.rel (%p458) target = $region52
        $region51: #{_lambda_.2} parent=39 // pred_region
          %s461 = sand.u32 %s26, 1
          %s462 = scalar_lea.sflag [#allocation6], %s461
          %s463 = sand.u32 %s122, 1
          %s464 = smul.addr %s463, 8
          %s465 = scalar_lea.vmem [#allocation7], %s464
          %s466 = sadd.s32 %s34, 1
          %s467 = smul.u32 %s466, 4
          %p468 = scmp.lt.s32.totalorder %s467, 15
          %s469 = scalar_select %p468, %s467, 15
          %s471 = ssub.s32 128, 128
          %472 = vsyncadd %s462, %s471
          %s473 = smul.addr %s33, 16
          %s474 = sadd.s32 %s469, %s473
          %s475 = smul.addr %s474, 128
          %s476 = scalar_lea.hbm %s2, %s475
          %s478 = sshll.u32 %s465, 4
          %s479 = int_to_ptr.vmem [resolvable:$true] %s478
          %481 = dma.hbm_to_vmem [thread:$0]  %s476, 128, %s479, %s462
        $region52: #{_lambda_.2} parent=39 // pred_fallthru
          _
      $region40: #{_lambda_.2} parent=5 // pred_fallthru
        _
      %p482 = scmp.le.s32.totalorder 1, %s26
      %p483 = scmp.lt.s32.totalorder %s26, 9
      %p484 = pnand %p482, %p483
      %p485 = pneg %p484
      // Predicated region
      $region53: #{_lambda_.2} parent=5 // pred_check
        _
      $region54: #{_lambda_.2} parent=5 // pred_check_branch
        %487 = sbr.rel (%p484) target = $region56
      $region55: #{_lambda_.2} parent=5 // pred_region
        %s488 = ssub.s32 %s26, 1
        %s489 = sand.u32 %s61, 1
        %s490 = scalar_lea.sflag [#allocation4], %s489
        %s491 = sand.u32 %s61, 1
        %s492 = smul.addr %s491, 8
        %s493 = scalar_lea.vmem [#allocation3], %s492
        // Predicated region
        $region57: #{_lambda_.2} parent=55 // pred_check
          %p494 = pneg %p74
        $region58: #{_lambda_.2} parent=55 // pred_check_branch
          %496 = sbr.rel (%p494) target = $region60
        $region59: #{_lambda_.2} parent=55 // pred_region
          %497 = dma.done %s490, 128
        $region60: #{_lambda_.2} parent=55 // pred_fallthru
          _
        %s498 = sand.u32 %s31, 1
        %s499 = scalar_lea.sflag [#allocation6], %s498
        %s500 = sand.u32 %s89, 1
        %s501 = smul.addr %s500, 32
        %s502 = scalar_lea.vmem [#allocation5], %s501
        // Predicated region
        $region61: #{_lambda_.2} parent=55 // pred_check
          %p503 = pneg %p102
        $region62: #{_lambda_.2} parent=55 // pred_check_branch
          %505 = sbr.rel (%p503) target = $region64
        $region63: #{_lambda_.2} parent=55 // pred_region
          %506 = dma.done %s499, 512
        $region64: #{_lambda_.2} parent=55 // pred_fallthru
          _
        %s507 = sand.u32 %s31, 1
        %s508 = scalar_lea.sflag [#allocation6], %s507
        %s509 = sand.u32 %s125, 1
        %s510 = smul.addr %s509, 8
        %s511 = scalar_lea.vmem [#allocation7], %s510
        // Predicated region
        $region65: #{_lambda_.2} parent=55 // pred_check
          %p512 = pneg %p138
        $region66: #{_lambda_.2} parent=55 // pred_check_branch
          %514 = sbr.rel (%p512) target = $region68
        $region67: #{_lambda_.2} parent=55 // pred_region
          %515 = dma.done %s508, 128
        $region68: #{_lambda_.2} parent=55 // pred_fallthru
          _
        // Predicated region
        $region69: #{_lambda_.2} parent=55 // pred_check
          %p516 = pneg %p159
        $region70: #{_lambda_.2} parent=55 // pred_check_branch
          %518 = sbr.rel (%p516) target = $region72
        $region71: #{_lambda_.2} parent=55 // pred_region
          %519 = dma.done [#allocation9], 1024
        $region72: #{_lambda_.2} parent=55 // pred_fallthru
          _
        // Predicated region
        $region73: #{_lambda_.2} parent=55 // pred_check
          %p520 = pneg %p180
        $region74: #{_lambda_.2} parent=55 // pred_check_branch
          %522 = sbr.rel (%p520) target = $region76
        $region75: #{_lambda_.2} parent=55 // pred_region
          %523 = dma.done [#allocation9], 1024
        $region76: #{_lambda_.2} parent=55 // pred_fallthru
          _
        // Predicated region
        $region77: #{_lambda_.2} parent=55 // pred_check
          %p524 = pneg %p243
        $region78: #{_lambda_.2} parent=55 // pred_check_branch
          %526 = sbr.rel (%p524) target = $region80
        $region79: #{_lambda_.2} parent=55 // pred_region
          %527 = dma.done [#allocation12], 256
        $region80: #{_lambda_.2} parent=55 // pred_fallthru
          _
        %s528 = sand.u32 %s61, 1
        %s529 = scalar_lea.sflag [#allocation4], %s528
        %s530 = sand.u32 %s61, 1
        %s531 = smul.addr %s530, 8
        %s532 = scalar_lea.vmem [#allocation3], %s531
        %p533 = pneg %p74
        %p534 = pneg %p71
        %s535 = sand.u32 %s31, 1
        %s536 = scalar_lea.sflag [#allocation6], %s535
        %s537 = sand.u32 %s89, 1
        %s538 = smul.addr %s537, 32
        %s539 = scalar_lea.vmem [#allocation5], %s538
        %p540 = pneg %p102
        %p541 = pneg %p99
        %s542 = sand.u32 %s31, 1
        %s543 = scalar_lea.sflag [#allocation6], %s542
        %s544 = sand.u32 %s125, 1
        %s545 = smul.addr %s544, 8
        %s546 = scalar_lea.vmem [#allocation7], %s545
        %p547 = pneg %p138
        %p548 = pneg %p135
        %p549 = pneg %p159
        %p550 = pneg %p156
        %p551 = pneg %p180
        %p552 = pneg %p177
        %p553 = pneg %p201
        %p554 = pneg %p198
        %p555 = pneg %p222
        %p556 = pneg %p219
        %p557 = pneg %p243
        %p558 = pneg %p240
        %p559 = pneg %p264
        %p560 = pneg %p261
        %p561 = pneg %p292
        %p562 = pneg %p289
        %s563 = smul.u32 4, %s36
        %p564 = scmp.lt.s32.totalorder %s35, 1
        %s565 = scalar_select %p564, %s35, 1
        %p566 = scmp.lt.s32.totalorder %s563, 15
        %s567 = scalar_select %p566, %s563, 15
        %s568 = smul.addr %s565, 16
        %s569 = sadd.s32 %s567, %s568
        %s570 = smul.addr %s569, 8
        %s571 = scalar_lea.vmem %s9, %s570
        %p572 = pneg %p318
        %p573 = pneg %p315
        %p574 = scmp.lt.s32.totalorder %s35, 1
        %s575 = scalar_select %p574, %s35, 1
        %s576 = scalar_lea.vmem %s10, %s575
        %p577 = pneg %p344
        %p578 = pneg %p341
        %p579 = scmp.lt.s32.totalorder %s35, 1
        %s580 = scalar_select %p579, %s35, 1
        %s581 = scalar_lea.vmem %s11, %s580
        %s582 = smul.u32 %s36, 4
        %s583 = ssub.s32 %s582, 1
        %p584 = scmp.gt.s32.totalorder %s583, 0
        %s585 = scalar_select %p584, %s583, 0
        %s586 = smul.u32 4, %s36
        %s587 = sadd.s32 %s36, 1
        %s588 = smul.u32 %s587, 4
        %p589 = scmp.lt.s32.totalorder %s588, 15
        %s590 = scalar_select %p589, %s588, 15
        %s591 = smul.u32 4, %s36
        %p592 = scmp.lt.s32.totalorder %s35, 1
        %s593 = scalar_select %p592, %s35, 1
        %p594 = scmp.lt.s32.totalorder %s591, 15
        %s595 = scalar_select %p594, %s591, 15
        %s596 = smul.addr %s593, 16
        %s597 = sadd.s32 %s595, %s596
        %s598 = smul.addr %s597, 8
        %s599 = scalar_lea.vmem %s9, %s598
        %s600 = smul.u32 4, %s36
        %p601 = scmp.lt.s32.totalorder %s35, 1
        %s602 = scalar_select %p601, %s35, 1
        %s603 = scalar_lea.vmem %s10, %s602
        %p604 = scmp.lt.s32.totalorder %s35, 1
        %s605 = scalar_select %p604, %s35, 1
        %s606 = scalar_lea.vmem %s11, %s605
        %v608 = vld [vmem:[%s502] sm:$0xff]
        %v609 = vld [vmem:[%s502 + $0x8] sm:$0xff]
        %v610 = vld [vmem:[%s502 + $0x10] sm:$0xff]
        %v611 = vld [vmem:[%s502 + $0x18] sm:$0xff]
        %v612 = vpack.c.bf16 %v609, %v608
        %v613 = vpack.c.bf16 %v611, %v610
        %v614 = vld [vmem:[#allocation8] sm:$0xf]
        %v615 = vld [vmem:[#allocation8 + $0x4] sm:$0xf]
        %v616 = vld [vmem:[#allocation8 + $0x8] sm:$0xf]
        %v617 = vld [vmem:[#allocation8 + $0xc] sm:$0xf]
        %v618 = vld [vmem:[#allocation8 + $0x10] sm:$0xf]
        %v619 = vld [vmem:[#allocation8 + $0x14] sm:$0xf]
        %v620 = vld [vmem:[#allocation8 + $0x18] sm:$0xf]
        %v621 = vld [vmem:[#allocation8 + $0x1c] sm:$0xf]
        %v622 = vld [vmem:[#allocation8 + $0x20] sm:$0xf]
        %v623 = vld [vmem:[#allocation8 + $0x24] sm:$0xf]
        %v624 = vld [vmem:[#allocation8 + $0x28] sm:$0xf]
        %v625 = vld [vmem:[#allocation8 + $0x2c] sm:$0xf]
        %v626 = vld [vmem:[#allocation8 + $0x30] sm:$0xf]
        %v627 = vld [vmem:[#allocation8 + $0x34] sm:$0xf]
        %v628 = vld [vmem:[#allocation8 + $0x38] sm:$0xf]
        %v629 = vld [vmem:[#allocation8 + $0x3c] sm:$0xf]
        %v630 = vld [vmem:[%s5] sm:$0x1]
        %v632 = vlaneseq
        %v633 = vshrl.u32 %v632, 7
        %v634 = vsub.s32 0, %v633
        %v635 = vrot.slane %v630, %v634
        %v653 = vunpack.c.l.b16 %v614
        %v654 = vunpack.c.l.b16 %v615
        %v655 = vunpack.c.l.b16 %v616
        %v656 = vunpack.c.l.b16 %v617
        %v657 = vunpack.c.l.b16 %v618
        %v658 = vunpack.c.l.b16 %v619
        %v659 = vunpack.c.l.b16 %v620
        %v660 = vunpack.c.l.b16 %v621
        %v661 = vunpack.c.l.b16 %v622
        %v662 = vunpack.c.l.b16 %v623
        %v663 = vunpack.c.l.b16 %v624
        %v664 = vunpack.c.l.b16 %v625
        %v665 = vunpack.c.l.b16 %v626
        %v666 = vunpack.c.l.b16 %v627
        %v667 = vunpack.c.l.b16 %v628
        %v668 = vunpack.c.l.b16 %v629
        %v669 = vpack.c.b16 %v654, %v653
        %v670 = vpack.c.b16 %v656, %v655
        %v671 = vpack.c.b16 %v658, %v657
        %v672 = vpack.c.b16 %v660, %v659
        %v673 = vpack.c.b16 %v662, %v661
        %v674 = vpack.c.b16 %v664, %v663
        %v675 = vpack.c.b16 %v666, %v665
        %v676 = vpack.c.b16 %v668, %v667
        %685 = vmatprep.subr.bf16.mxu0 0
        %686 = vmatpush1.bf16.msra.mxu0 %v676
        %687 = vmatprep.subr.bf16.mxu0 0
        %688 = vmatpush1.bf16.msra.mxu0 %v675
        %689 = vmatprep.subr.bf16.mxu0 0
        %690 = vmatpush1.bf16.msra.mxu0 %v674
        %691 = vmatprep.subr.bf16.mxu0 0
        %692 = vmatpush1.bf16.msra.mxu0 %v673
        %693 = vmatprep.subr.bf16.mxu0 0
        %694 = vmatpush1.bf16.msra.mxu0 %v672
        %695 = vmatprep.subr.bf16.mxu0 0
        %696 = vmatpush1.bf16.msra.mxu0 %v671
        %697 = vmatprep.subr.bf16.mxu0 0
        %698 = vmatpush1.bf16.msra.mxu0 %v670
        %699 = vmatprep.subr.bf16.mxu0 0
        %700 = vmatpush1.bf16.msra.mxu0 %v669
        %701 = vmatprep.subr.bf16.mxu0 0
        %702 = vmatpush2.bf16.msra.mxu0 0
        %703 = vmatprep.subr.bf16.mxu0 0
        %704 = vmatpush2.bf16.msra.mxu0 0
        %705 = vmatprep.subr.bf16.mxu0 0
        %706 = vmatpush2.bf16.msra.mxu0 0
        %707 = vmatprep.subr.bf16.mxu0 0
        %708 = vmatpush2.bf16.msra.mxu0 0
        %709 = vmatprep.subr.bf16.mxu0 0
        %710 = vmatpush2.bf16.msra.mxu0 0
        %711 = vmatprep.subr.bf16.mxu0 0
        %712 = vmatpush2.bf16.msra.mxu0 0
        %713 = vmatprep.subr.bf16.mxu0 0
        %714 = vmatpush2.bf16.msra.mxu0 0
        %715 = vmatprep.subr.bf16.mxu0 0
        %716 = vmatpush2.bf16.msra.mxu0 0
        %717 = vmatprep.mubr.bf16.mxu0 0
        %718 = vmatmul.mubr.bf16.gmra.mxu0 %v612
        %v719 = vpop.f32.mrf.mxu0
        %v720 = vadd.f32 %v635, %v719
        %v721 = vpop.f32.mrf.mxu0
        %v722 = vpop.f32.mrf.mxu0
        %v723 = vadd.f32 %v635, %v722
        %v724 = vpop.f32.mrf.mxu0
        %725 = vmatprep.mubr.bf16.mxu0 0
        %726 = vmatmul.mubr.bf16.gmra.mxu0 %v613
        %v727 = vpop.f32.mrf.mxu0
        %v728 = vadd.f32 %v635, %v727
        %v729 = vpop.f32.mrf.mxu0
        %v730 = vpop.f32.mrf.mxu0
        %v731 = vadd.f32 %v635, %v730
        %v732 = vpop.f32.mrf.mxu0
        %733 = vdwg.mxu0
        %v734 = vld [vmem:[#allocation10] sm:$0xf]
        %v735 = vld [vmem:[#allocation10 + $0x4] sm:$0xf]
        %v736 = vld [vmem:[#allocation10 + $0x8] sm:$0xf]
        %v737 = vld [vmem:[#allocation10 + $0xc] sm:$0xf]
        %v738 = vld [vmem:[#allocation10 + $0x10] sm:$0xf]
        %v739 = vld [vmem:[#allocation10 + $0x14] sm:$0xf]
        %v740 = vld [vmem:[#allocation10 + $0x18] sm:$0xf]
        %v741 = vld [vmem:[#allocation10 + $0x1c] sm:$0xf]
        %v742 = vld [vmem:[#allocation10 + $0x20] sm:$0xf]
        %v743 = vld [vmem:[#allocation10 + $0x24] sm:$0xf]
        %v744 = vld [vmem:[#allocation10 + $0x28] sm:$0xf]
        %v745 = vld [vmem:[#allocation10 + $0x2c] sm:$0xf]
        %v746 = vld [vmem:[#allocation10 + $0x30] sm:$0xf]
        %v747 = vld [vmem:[#allocation10 + $0x34] sm:$0xf]
        %v748 = vld [vmem:[#allocation10 + $0x38] sm:$0xf]
        %v749 = vld [vmem:[#allocation10 + $0x3c] sm:$0xf]
        %v750 = vld [vmem:[%s6] sm:$0x1]
        %v752 = vlaneseq
        %v753 = vshrl.u32 %v752, 7
        %v754 = vsub.s32 0, %v753
        %v755 = vrot.slane %v750, %v754
        %v773 = vunpack.c.l.b16 %v734
        %v774 = vunpack.c.l.b16 %v735
        %v775 = vunpack.c.l.b16 %v736
        %v776 = vunpack.c.l.b16 %v737
        %v777 = vunpack.c.l.b16 %v738
        %v778 = vunpack.c.l.b16 %v739
        %v779 = vunpack.c.l.b16 %v740
        %v780 = vunpack.c.l.b16 %v741
        %v781 = vunpack.c.l.b16 %v742
        %v782 = vunpack.c.l.b16 %v743
        %v783 = vunpack.c.l.b16 %v744
        %v784 = vunpack.c.l.b16 %v745
        %v785 = vunpack.c.l.b16 %v746
        %v786 = vunpack.c.l.b16 %v747
        %v787 = vunpack.c.l.b16 %v748
        %v788 = vunpack.c.l.b16 %v749
        %v789 = vpack.c.b16 %v774, %v773
        %v790 = vpack.c.b16 %v776, %v775
        %v791 = vpack.c.b16 %v778, %v777
        %v792 = vpack.c.b16 %v780, %v779
        %v793 = vpack.c.b16 %v782, %v781
        %v794 = vpack.c.b16 %v784, %v783
        %v795 = vpack.c.b16 %v786, %v785
        %v796 = vpack.c.b16 %v788, %v787
        %805 = vmatprep.subr.bf16.mxu0 0
        %806 = vmatpush1.bf16.msra.mxu0 %v796
        %807 = vmatprep.subr.bf16.mxu0 0
        %808 = vmatpush1.bf16.msra.mxu0 %v795
        %809 = vmatprep.subr.bf16.mxu0 0
        %810 = vmatpush1.bf16.msra.mxu0 %v794
        %811 = vmatprep.subr.bf16.mxu0 0
        %812 = vmatpush1.bf16.msra.mxu0 %v793
        %813 = vmatprep.subr.bf16.mxu0 0
        %814 = vmatpush1.bf16.msra.mxu0 %v792
        %815 = vmatprep.subr.bf16.mxu0 0
        %816 = vmatpush1.bf16.msra.mxu0 %v791
        %817 = vmatprep.subr.bf16.mxu0 0
        %818 = vmatpush1.bf16.msra.mxu0 %v790
        %819 = vmatprep.subr.bf16.mxu0 0
        %820 = vmatpush1.bf16.msra.mxu0 %v789
        %821 = vmatprep.subr.bf16.mxu0 0
        %822 = vmatpush2.bf16.msra.mxu0 0
        %823 = vmatprep.subr.bf16.mxu0 0
        %824 = vmatpush2.bf16.msra.mxu0 0
        %825 = vmatprep.subr.bf16.mxu0 0
        %826 = vmatpush2.bf16.msra.mxu0 0
        %827 = vmatprep.subr.bf16.mxu0 0
        %828 = vmatpush2.bf16.msra.mxu0 0
        %829 = vmatprep.subr.bf16.mxu0 0
        %830 = vmatpush2.bf16.msra.mxu0 0
        %831 = vmatprep.subr.bf16.mxu0 0
        %832 = vmatpush2.bf16.msra.mxu0 0
        %833 = vmatprep.subr.bf16.mxu0 0
        %834 = vmatpush2.bf16.msra.mxu0 0
        %835 = vmatprep.subr.bf16.mxu0 0
        %836 = vmatpush2.bf16.msra.mxu0 0
        %837 = vmatprep.mubr.bf16.mxu0 0
        %838 = vmatmul.mubr.bf16.gmra.mxu0 %v612
        %v839 = vpop.f32.mrf.mxu0
        %v840 = vadd.f32 %v755, %v839
        %v841 = vpop.f32.mrf.mxu0
        %v842 = vpop.f32.mrf.mxu0
        %v843 = vadd.f32 %v755, %v842
        %v844 = vpop.f32.mrf.mxu0
        %845 = vmatprep.mubr.bf16.mxu0 0
        %846 = vmatmul.mubr.bf16.gmra.mxu0 %v613
        %v847 = vpop.f32.mrf.mxu0
        %v848 = vadd.f32 %v755, %v847
        %v849 = vpop.f32.mrf.mxu0
        %v850 = vpop.f32.mrf.mxu0
        %v851 = vadd.f32 %v755, %v850
        %v852 = vpop.f32.mrf.mxu0
        %853 = vdwg.mxu0
        %v854 = vxor.u32 %v840, 2147483648
        %v855 = vxor.u32 %v843, 2147483648
        %v856 = vxor.u32 %v848, 2147483648
        %v857 = vxor.u32 %v851, 2147483648
        %v858 = vmul.f32 %v854, 1.442695
        %v859 = vpow.pop %v858
        %v860 = vmul.f32 %v855, 1.442695
        %v861 = vpow.pop %v860
        %v862 = vmul.f32 %v856, 1.442695
        %v863 = vpow.pop %v862
        %v864 = vmul.f32 %v857, 1.442695
        %v865 = vpow.pop %v864
        %v866 = vadd.f32 %v859, 1.0
        %v867 = vadd.f32 %v861, 1.0
        %v868 = vadd.f32 %v863, 1.0
        %v869 = vadd.f32 %v865, 1.0
        %v870 = vrcp.pop %v866
        %v871 = vmul.f32 1.0, %v870
        %v872 = vrcp.pop %v867
        %v873 = vmul.f32 1.0, %v872
        %v874 = vrcp.pop %v868
        %v875 = vmul.f32 1.0, %v874
        %v876 = vrcp.pop %v869
        %v877 = vmul.f32 1.0, %v876
        %v878 = vmul.f32 %v720, %v871
        %v879 = vmul.f32 %v723, %v873
        %v880 = vmul.f32 %v728, %v875
        %v881 = vmul.f32 %v731, %v877
        %v882 = vld [vmem:[%s493] sm:$0xff]
        %v883 = vpack.c.bf16 %v882, %v882
        %884 = vmatprep.subr.bf16.mxu0 0
        %885 = vmatpush1.bf16.msra.mxu0 %v676
        %886 = vmatprep.subr.bf16.mxu0 0
        %887 = vmatpush1.bf16.msra.mxu0 %v675
        %888 = vmatprep.subr.bf16.mxu0 0
        %889 = vmatpush1.bf16.msra.mxu0 %v674
        %890 = vmatprep.subr.bf16.mxu0 0
        %891 = vmatpush1.bf16.msra.mxu0 %v673
        %892 = vmatprep.subr.bf16.mxu0 0
        %893 = vmatpush1.bf16.msra.mxu0 %v672
        %894 = vmatprep.subr.bf16.mxu0 0
        %895 = vmatpush1.bf16.msra.mxu0 %v671
        %896 = vmatprep.subr.bf16.mxu0 0
        %897 = vmatpush1.bf16.msra.mxu0 %v670
        %898 = vmatprep.subr.bf16.mxu0 0
        %899 = vmatpush1.bf16.msra.mxu0 %v669
        %900 = vmatprep.subr.bf16.mxu0 0
        %901 = vmatpush2.bf16.msra.mxu0 0
        %902 = vmatprep.subr.bf16.mxu0 0
        %903 = vmatpush2.bf16.msra.mxu0 0
        %904 = vmatprep.subr.bf16.mxu0 0
        %905 = vmatpush2.bf16.msra.mxu0 0
        %906 = vmatprep.subr.bf16.mxu0 0
        %907 = vmatpush2.bf16.msra.mxu0 0
        %908 = vmatprep.subr.bf16.mxu0 0
        %909 = vmatpush2.bf16.msra.mxu0 0
        %910 = vmatprep.subr.bf16.mxu0 0
        %911 = vmatpush2.bf16.msra.mxu0 0
        %912 = vmatprep.subr.bf16.mxu0 0
        %913 = vmatpush2.bf16.msra.mxu0 0
        %914 = vmatprep.subr.bf16.mxu0 0
        %915 = vmatpush2.bf16.msra.mxu0 0
        %916 = vmatprep.mubr.bf16.mxu0 0
        %917 = vmatmul.mubr.bf16.gmra.mxu0 %v883
        %v918 = vpop.f32.mrf.mxu0
        %v919 = vadd.f32 %v635, %v918
        %v920 = vpop.f32.mrf.mxu0
        %v921 = vpop.f32.mrf.mxu0
        %v922 = vpop.f32.mrf.mxu0
        %923 = vdwg.mxu0
        %924 = vmatprep.subr.bf16.mxu0 0
        %925 = vmatpush1.bf16.msra.mxu0 %v796
        %926 = vmatprep.subr.bf16.mxu0 0
        %927 = vmatpush1.bf16.msra.mxu0 %v795
        %928 = vmatprep.subr.bf16.mxu0 0
        %929 = vmatpush1.bf16.msra.mxu0 %v794
        %930 = vmatprep.subr.bf16.mxu0 0
        %931 = vmatpush1.bf16.msra.mxu0 %v793
        %932 = vmatprep.subr.bf16.mxu0 0
        %933 = vmatpush1.bf16.msra.mxu0 %v792
        %934 = vmatprep.subr.bf16.mxu0 0
        %935 = vmatpush1.bf16.msra.mxu0 %v791
        %936 = vmatprep.subr.bf16.mxu0 0
        %937 = vmatpush1.bf16.msra.mxu0 %v790
        %938 = vmatprep.subr.bf16.mxu0 0
        %939 = vmatpush1.bf16.msra.mxu0 %v789
        %940 = vmatprep.subr.bf16.mxu0 0
        %941 = vmatpush2.bf16.msra.mxu0 0
        %942 = vmatprep.subr.bf16.mxu0 0
        %943 = vmatpush2.bf16.msra.mxu0 0
        %944 = vmatprep.subr.bf16.mxu0 0
        %945 = vmatpush2.bf16.msra.mxu0 0
        %946 = vmatprep.subr.bf16.mxu0 0
        %947 = vmatpush2.bf16.msra.mxu0 0
        %948 = vmatprep.subr.bf16.mxu0 0
        %949 = vmatpush2.bf16.msra.mxu0 0
        %950 = vmatprep.subr.bf16.mxu0 0
        %951 = vmatpush2.bf16.msra.mxu0 0
        %952 = vmatprep.subr.bf16.mxu0 0
        %953 = vmatpush2.bf16.msra.mxu0 0
        %954 = vmatprep.subr.bf16.mxu0 0
        %955 = vmatpush2.bf16.msra.mxu0 0
        %956 = vmatprep.mubr.bf16.mxu0 0
        %957 = vmatmul.mubr.bf16.gmra.mxu0 %v883
        %v958 = vpop.f32.mrf.mxu0
        %v959 = vadd.f32 %v755, %v958
        %v960 = vpop.f32.mrf.mxu0
        %v961 = vpop.f32.mrf.mxu0
        %v962 = vpop.f32.mrf.mxu0
        %963 = vdwg.mxu0
        %v964 = vxor.u32 %v959, 2147483648
        %v965 = vmul.f32 %v964, 1.442695
        %v966 = vpow.pop %v965
        %v967 = vadd.f32 %v966, 1.0
        %v968 = vrcp.pop %v967
        %v969 = vmul.f32 1.0, %v968
        %v970 = vmul.f32 %v919, %v969
        %v971 = vld [vmem:[%s511] sm:$0xff]
        %v972 = vpack.c.bf16 %v971, %v971
        %973 = vmatprep.subr.bf16.mxu0 0
        %974 = vmatpush1.bf16.msra.mxu0 %v676
        %975 = vmatprep.subr.bf16.mxu0 0
        %976 = vmatpush1.bf16.msra.mxu0 %v675
        %977 = vmatprep.subr.bf16.mxu0 0
        %978 = vmatpush1.bf16.msra.mxu0 %v674
        %979 = vmatprep.subr.bf16.mxu0 0
        %980 = vmatpush1.bf16.msra.mxu0 %v673
        %981 = vmatprep.subr.bf16.mxu0 0
        %982 = vmatpush1.bf16.msra.mxu0 %v672
        %983 = vmatprep.subr.bf16.mxu0 0
        %984 = vmatpush1.bf16.msra.mxu0 %v671
        %985 = vmatprep.subr.bf16.mxu0 0
        %986 = vmatpush1.bf16.msra.mxu0 %v670
        %987 = vmatprep.subr.bf16.mxu0 0
        %988 = vmatpush1.bf16.msra.mxu0 %v669
        %989 = vmatprep.subr.bf16.mxu0 0
        %990 = vmatpush2.bf16.msra.mxu0 0
        %991 = vmatprep.subr.bf16.mxu0 0
        %992 = vmatpush2.bf16.msra.mxu0 0
        %993 = vmatprep.subr.bf16.mxu0 0
        %994 = vmatpush2.bf16.msra.mxu0 0
        %995 = vmatprep.subr.bf16.mxu0 0
        %996 = vmatpush2.bf16.msra.mxu0 0
        %997 = vmatprep.subr.bf16.mxu0 0
        %998 = vmatpush2.bf16.msra.mxu0 0
        %999 = vmatprep.subr.bf16.mxu0 0
        %1000 = vmatpush2.bf16.msra.mxu0 0
        %1001 = vmatprep.subr.bf16.mxu0 0
        %1002 = vmatpush2.bf16.msra.mxu0 0
        %1003 = vmatprep.subr.bf16.mxu0 0
        %1004 = vmatpush2.bf16.msra.mxu0 0
        %1005 = vmatprep.mubr.bf16.mxu0 0
        %1006 = vmatmul.mubr.bf16.gmra.mxu0 %v972
        %v1007 = vpop.f32.mrf.mxu0
        %v1008 = vadd.f32 %v635, %v1007
        %v1009 = vpop.f32.mrf.mxu0
        %v1010 = vpop.f32.mrf.mxu0
        %v1011 = vpop.f32.mrf.mxu0
        %1012 = vdwg.mxu0
        %1013 = vmatprep.subr.bf16.mxu0 0
        %1014 = vmatpush1.bf16.msra.mxu0 %v796
        %1015 = vmatprep.subr.bf16.mxu0 0
        %1016 = vmatpush1.bf16.msra.mxu0 %v795
        %1017 = vmatprep.subr.bf16.mxu0 0
        %1018 = vmatpush1.bf16.msra.mxu0 %v794
        %1019 = vmatprep.subr.bf16.mxu0 0
        %1020 = vmatpush1.bf16.msra.mxu0 %v793
        %1021 = vmatprep.subr.bf16.mxu0 0
        %1022 = vmatpush1.bf16.msra.mxu0 %v792
        %1023 = vmatprep.subr.bf16.mxu0 0
        %1024 = vmatpush1.bf16.msra.mxu0 %v791
        %1025 = vmatprep.subr.bf16.mxu0 0
        %1026 = vmatpush1.bf16.msra.mxu0 %v790
        %1027 = vmatprep.subr.bf16.mxu0 0
        %1028 = vmatpush1.bf16.msra.mxu0 %v789
        %1029 = vmatprep.subr.bf16.mxu0 0
        %1030 = vmatpush2.bf16.msra.mxu0 0
        %1031 = vmatprep.subr.bf16.mxu0 0
        %1032 = vmatpush2.bf16.msra.mxu0 0
        %1033 = vmatprep.subr.bf16.mxu0 0
        %1034 = vmatpush2.bf16.msra.mxu0 0
        %1035 = vmatprep.subr.bf16.mxu0 0
        %1036 = vmatpush2.bf16.msra.mxu0 0
        %1037 = vmatprep.subr.bf16.mxu0 0
        %1038 = vmatpush2.bf16.msra.mxu0 0
        %1039 = vmatprep.subr.bf16.mxu0 0
        %1040 = vmatpush2.bf16.msra.mxu0 0
        %1041 = vmatprep.subr.bf16.mxu0 0
        %1042 = vmatpush2.bf16.msra.mxu0 0
        %1043 = vmatprep.subr.bf16.mxu0 0
        %1044 = vmatpush2.bf16.msra.mxu0 0
        %1045 = vmatprep.mubr.bf16.mxu0 0
        %1046 = vmatmul.mubr.bf16.gmra.mxu0 %v972
        %v1047 = vpop.f32.mrf.mxu0
        %v1048 = vadd.f32 %v755, %v1047
        %v1049 = vpop.f32.mrf.mxu0
        %v1050 = vpop.f32.mrf.mxu0
        %v1051 = vpop.f32.mrf.mxu0
        %1052 = vdwg.mxu0
        %v1053 = vxor.u32 %v1048, 2147483648
        %v1054 = vmul.f32 %v1053, 1.442695
        %v1055 = vpow.pop %v1054
        %v1056 = vadd.f32 %v1055, 1.0
        %v1057 = vrcp.pop %v1056
        %v1058 = vmul.f32 1.0, %v1057
        %v1059 = vmul.f32 %v1008, %v1058
        %p1060 = scmp.eq.s32.totalorder %s36, 0
        %s1061 = scalar_select %p1060, 1, 0
        %v1062 = vstv %s1061
        %vm1063 = vcmp.eq.s32.totalorder %v1062, 1
        %v1064 = vsel %vm1063, 0.0, %v970
        %p1065 = scmp.eq.s32.totalorder %s36, 3
        %s1066 = scalar_select %p1065, 1, 0
        %v1067 = vstv %s1066
        %vm1068 = vcmp.eq.s32.totalorder %v1067, 1
        %v1069 = vsel %vm1068, 0.0, %v1059
        %1070 = vst [vmem:[#allocation2] sm:$0xff] %v1064
        %1071 = vst [vmem:[#allocation2 + $0x8] sm:$0xff] %v878
        %1072 = vst [vmem:[#allocation2 + $0x10] sm:$0xff] %v879
        %1073 = vst [vmem:[#allocation2 + $0x18] sm:$0xff] %v880
        %1074 = vst [vmem:[#allocation2 + $0x20] sm:$0xff] %v881
        %1075 = vst [vmem:[#allocation2 + $0x28] sm:$0xff] %v1069
        %v1076 = vld [vmem:[#allocation2] sm:$0xff]
        %v1077 = vld [vmem:[#allocation2 + $0x8] sm:$0xff]
        %v1078 = vld [vmem:[#allocation2 + $0x10] sm:$0xff]
        %v1079 = vld [vmem:[#allocation2 + $0x18] sm:$0xff]
        %v1080 = vld [vmem:[#allocation2 + $0x20] sm:$0xff]
        %v1081 = vld [vmem:[#allocation2 + $0x28] sm:$0xff]
        %v1082 = vld [vmem:[#allocation11] sm:$0xff]
        %v1083 = vld [vmem:[#allocation11 + $0x8] sm:$0x7f]
        %v1084 = vrot.slane %v1076, 1
        %v1085 = vrot.slane %v1077, 1
        %v1086 = vrot.slane %v1078, 1
        %v1087 = vrot.slane %v1079, 1
        %v1088 = vrot.slane %v1080, 1
        %v1089 = vlaneseq
        %v1090 = vshrl.u32 %v1089, 7
        %vm1091 = vcmp.lt.s32.totalorder %v1090, 7
        %v1092 = vsel %vm1091, %v1087, %v1088
        %v1093 = vsel %vm1091, %v1086, %v1087
        %v1094 = vsel %vm1091, %v1085, %v1086
        %v1095 = vsel %vm1091, %v1084, %v1085
        %v1096 = vlaneseq
        %v1097 = vshrl.u32 %v1096, 7
        %v1098 = vsub.s32 0, %v1097
        %v1099 = vrot.slane %v1082, %v1098
        %v1100 = vmul.f32 %v1095, %v1099
        %v1101 = vmul.f32 %v1094, %v1099
        %v1102 = vmul.f32 %v1093, %v1099
        %v1103 = vmul.f32 %v1092, %v1099
        %v1104 = vadd.f32 %v1100, 0.0
        %v1105 = vadd.f32 %v1101, 0.0
        %v1106 = vadd.f32 %v1102, 0.0
        %v1107 = vadd.f32 %v1103, 0.0
        %v1108 = vrot.slane %v1076, 2
        %v1109 = vrot.slane %v1077, 2
        %v1110 = vrot.slane %v1078, 2
        %v1111 = vrot.slane %v1079, 2
        %v1112 = vrot.slane %v1080, 2
        %vm1113 = vcmp.lt.s32.totalorder %v1090, 6
        %v1114 = vsel %vm1113, %v1111, %v1112
        %v1115 = vsel %vm1113, %v1110, %v1111
        %v1116 = vsel %vm1113, %v1109, %v1110
        %v1117 = vsel %vm1113, %v1108, %v1109
        %v1118 = vlaneseq
        %v1119 = vshrl.u32 %v1118, 7
        %v1120 = vsub.s32 1, %v1119
        %v1121 = vrot.slane %v1082, %v1120
        %v1122 = vmul.f32 %v1117, %v1121
        %v1123 = vmul.f32 %v1116, %v1121
        %v1124 = vmul.f32 %v1115, %v1121
        %v1125 = vmul.f32 %v1114, %v1121
        %v1126 = vadd.f32 %v1104, %v1122
        %v1127 = vadd.f32 %v1105, %v1123
        %v1128 = vadd.f32 %v1106, %v1124
        %v1129 = vadd.f32 %v1107, %v1125
        %v1130 = vrot.slane %v1076, 3
        %v1131 = vrot.slane %v1077, 3
        %v1132 = vrot.slane %v1078, 3
        %v1133 = vrot.slane %v1079, 3
        %v1134 = vrot.slane %v1080, 3
        %vm1135 = vcmp.lt.s32.totalorder %v1090, 5
        %v1136 = vsel %vm1135, %v1133, %v1134
        %v1137 = vsel %vm1135, %v1132, %v1133
        %v1138 = vsel %vm1135, %v1131, %v1132
        %v1139 = vsel %vm1135, %v1130, %v1131
        %v1140 = vlaneseq
        %v1141 = vshrl.u32 %v1140, 7
        %v1142 = vsub.s32 2, %v1141
        %v1143 = vrot.slane %v1082, %v1142
        %v1144 = vmul.f32 %v1139, %v1143
        %v1145 = vmul.f32 %v1138, %v1143
        %v1146 = vmul.f32 %v1137, %v1143
        %v1147 = vmul.f32 %v1136, %v1143
        %v1148 = vadd.f32 %v1126, %v1144
        %v1149 = vadd.f32 %v1127, %v1145
        %v1150 = vadd.f32 %v1128, %v1146
        %v1151 = vadd.f32 %v1129, %v1147
        %v1152 = vrot.slane %v1076, 4
        %v1153 = vrot.slane %v1077, 4
        %v1154 = vrot.slane %v1078, 4
        %v1155 = vrot.slane %v1079, 4
        %v1156 = vrot.slane %v1080, 4
        %vm1157 = vcmp.lt.s32.totalorder %v1090, 4
        %v1158 = vsel %vm1157, %v1155, %v1156
        %v1159 = vsel %vm1157, %v1154, %v1155
        %v1160 = vsel %vm1157, %v1153, %v1154
        %v1161 = vsel %vm1157, %v1152, %v1153
        %v1162 = vlaneseq
        %v1163 = vshrl.u32 %v1162, 7
        %v1164 = vsub.s32 3, %v1163
        %v1165 = vrot.slane %v1082, %v1164
        %v1166 = vmul.f32 %v1161, %v1165
        %v1167 = vmul.f32 %v1160, %v1165
        %v1168 = vmul.f32 %v1159, %v1165
        %v1169 = vmul.f32 %v1158, %v1165
        %v1170 = vadd.f32 %v1148, %v1166
        %v1171 = vadd.f32 %v1149, %v1167
        %v1172 = vadd.f32 %v1150, %v1168
        %v1173 = vadd.f32 %v1151, %v1169
        %v1174 = vrot.slane %v1076, 5
        %v1175 = vrot.slane %v1077, 5
        %v1176 = vrot.slane %v1078, 5
        %v1177 = vrot.slane %v1079, 5
        %v1178 = vrot.slane %v1080, 5
        %vm1179 = vcmp.lt.s32.totalorder %v1090, 3
        %v1180 = vsel %vm1179, %v1177, %v1178
        %v1181 = vsel %vm1179, %v1176, %v1177
        %v1182 = vsel %vm1179, %v1175, %v1176
        %v1183 = vsel %vm1179, %v1174, %v1175
        %v1184 = vlaneseq
        %v1185 = vshrl.u32 %v1184, 7
        %v1186 = vsub.s32 4, %v1185
        %v1187 = vrot.slane %v1082, %v1186
        %v1188 = vmul.f32 %v1183, %v1187
        %v1189 = vmul.f32 %v1182, %v1187
        %v1190 = vmul.f32 %v1181, %v1187
        %v1191 = vmul.f32 %v1180, %v1187
        %v1192 = vadd.f32 %v1170, %v1188
        %v1193 = vadd.f32 %v1171, %v1189
        %v1194 = vadd.f32 %v1172, %v1190
        %v1195 = vadd.f32 %v1173, %v1191
        %v1196 = vrot.slane %v1076, 6
        %v1197 = vrot.slane %v1077, 6
        %v1198 = vrot.slane %v1078, 6
        %v1199 = vrot.slane %v1079, 6
        %v1200 = vrot.slane %v1080, 6
        %vm1201 = vcmp.lt.s32.totalorder %v1090, 2
        %v1202 = vsel %vm1201, %v1199, %v1200
        %v1203 = vsel %vm1201, %v1198, %v1199
        %v1204 = vsel %vm1201, %v1197, %v1198
        %v1205 = vsel %vm1201, %v1196, %v1197
        %v1206 = vlaneseq
        %v1207 = vshrl.u32 %v1206, 7
        %v1208 = vsub.s32 5, %v1207
        %v1209 = vrot.slane %v1082, %v1208
        %v1210 = vmul.f32 %v1205, %v1209
        %v1211 = vmul.f32 %v1204, %v1209
        %v1212 = vmul.f32 %v1203, %v1209
        %v1213 = vmul.f32 %v1202, %v1209
        %v1214 = vadd.f32 %v1192, %v1210
        %v1215 = vadd.f32 %v1193, %v1211
        %v1216 = vadd.f32 %v1194, %v1212
        %v1217 = vadd.f32 %v1195, %v1213
        %v1218 = vrot.slane %v1076, 7
        %v1219 = vrot.slane %v1077, 7
        %v1220 = vrot.slane %v1078, 7
        %v1221 = vrot.slane %v1079, 7
        %v1222 = vrot.slane %v1080, 7
        %vm1223 = vcmp.lt.s32.totalorder %v1090, 1
        %v1224 = vsel %vm1223, %v1221, %v1222
        %v1225 = vsel %vm1223, %v1220, %v1221
        %v1226 = vsel %vm1223, %v1219, %v1220
        %v1227 = vsel %vm1223, %v1218, %v1219
        %v1228 = vlaneseq
        %v1229 = vshrl.u32 %v1228, 7
        %v1230 = vsub.s32 6, %v1229
        %v1231 = vrot.slane %v1082, %v1230
        %v1232 = vmul.f32 %v1227, %v1231
        %v1233 = vmul.f32 %v1226, %v1231
        %v1234 = vmul.f32 %v1225, %v1231
        %v1235 = vmul.f32 %v1224, %v1231
        %v1236 = vadd.f32 %v1214, %v1232
        %v1237 = vadd.f32 %v1215, %v1233
        %v1238 = vadd.f32 %v1216, %v1234
        %v1239 = vadd.f32 %v1217, %v1235
        %v1240 = vlaneseq
        %v1241 = vshrl.u32 %v1240, 7
        %v1242 = vsub.s32 7, %v1241
        %v1243 = vrot.slane %v1082, %v1242
        %v1244 = vmul.f32 %v1077, %v1243
        %v1245 = vmul.f32 %v1078, %v1243
        %v1246 = vmul.f32 %v1079, %v1243
        %v1247 = vmul.f32 %v1080, %v1243
        %v1248 = vadd.f32 %v1236, %v1244
        %v1249 = vadd.f32 %v1237, %v1245
        %v1250 = vadd.f32 %v1238, %v1246
        %v1251 = vadd.f32 %v1239, %v1247
        %v1252 = vrot.slane %v1081, 1
        %v1253 = vsel %vm1091, %v1088, %v1252
        %v1254 = vlaneseq
        %v1255 = vshrl.u32 %v1254, 7
        %v1256 = vsub.s32 0, %v1255
        %v1257 = vrot.slane %v1083, %v1256
        %v1258 = vmul.f32 %v1094, %v1257
        %v1259 = vmul.f32 %v1093, %v1257
        %v1260 = vmul.f32 %v1092, %v1257
        %v1261 = vmul.f32 %v1253, %v1257
        %v1262 = vadd.f32 %v1248, %v1258
        %v1263 = vadd.f32 %v1249, %v1259
        %v1264 = vadd.f32 %v1250, %v1260
        %v1265 = vadd.f32 %v1251, %v1261
        %v1266 = vrot.slane %v1081, 2
        %v1267 = vsel %vm1113, %v1112, %v1266
        %v1268 = vlaneseq
        %v1269 = vshrl.u32 %v1268, 7
        %v1270 = vsub.s32 1, %v1269
        %v1271 = vrot.slane %v1083, %v1270
        %v1272 = vmul.f32 %v1116, %v1271
        %v1273 = vmul.f32 %v1115, %v1271
        %v1274 = vmul.f32 %v1114, %v1271
        %v1275 = vmul.f32 %v1267, %v1271
        %v1276 = vadd.f32 %v1262, %v1272
        %v1277 = vadd.f32 %v1263, %v1273
        %v1278 = vadd.f32 %v1264, %v1274
        %v1279 = vadd.f32 %v1265, %v1275
        %v1280 = vrot.slane %v1081, 3
        %v1281 = vsel %vm1135, %v1134, %v1280
        %v1282 = vlaneseq
        %v1283 = vshrl.u32 %v1282, 7
        %v1284 = vsub.s32 2, %v1283
        %v1285 = vrot.slane %v1083, %v1284
        %v1286 = vmul.f32 %v1138, %v1285
        %v1287 = vmul.f32 %v1137, %v1285
        %v1288 = vmul.f32 %v1136, %v1285
        %v1289 = vmul.f32 %v1281, %v1285
        %v1290 = vadd.f32 %v1276, %v1286
        %v1291 = vadd.f32 %v1277, %v1287
        %v1292 = vadd.f32 %v1278, %v1288
        %v1293 = vadd.f32 %v1279, %v1289
        %v1294 = vrot.slane %v1081, 4
        %v1295 = vsel %vm1157, %v1156, %v1294
        %v1296 = vlaneseq
        %v1297 = vshrl.u32 %v1296, 7
        %v1298 = vsub.s32 3, %v1297
        %v1299 = vrot.slane %v1083, %v1298
        %v1300 = vmul.f32 %v1160, %v1299
        %v1301 = vmul.f32 %v1159, %v1299
        %v1302 = vmul.f32 %v1158, %v1299
        %v1303 = vmul.f32 %v1295, %v1299
        %v1304 = vadd.f32 %v1290, %v1300
        %v1305 = vadd.f32 %v1291, %v1301
        %v1306 = vadd.f32 %v1292, %v1302
        %v1307 = vadd.f32 %v1293, %v1303
        %v1308 = vrot.slane %v1081, 5
        %v1309 = vsel %vm1179, %v1178, %v1308
        %v1310 = vlaneseq
        %v1311 = vshrl.u32 %v1310, 7
        %v1312 = vsub.s32 4, %v1311
        %v1313 = vrot.slane %v1083, %v1312
        %v1314 = vmul.f32 %v1182, %v1313
        %v1315 = vmul.f32 %v1181, %v1313
        %v1316 = vmul.f32 %v1180, %v1313
        %v1317 = vmul.f32 %v1309, %v1313
        %v1318 = vadd.f32 %v1304, %v1314
        %v1319 = vadd.f32 %v1305, %v1315
        %v1320 = vadd.f32 %v1306, %v1316
        %v1321 = vadd.f32 %v1307, %v1317
        %v1322 = vrot.slane %v1081, 6
        %v1323 = vsel %vm1201, %v1200, %v1322
        %v1324 = vlaneseq
        %v1325 = vshrl.u32 %v1324, 7
        %v1326 = vsub.s32 5, %v1325
        %v1327 = vrot.slane %v1083, %v1326
        %v1328 = vmul.f32 %v1204, %v1327
        %v1329 = vmul.f32 %v1203, %v1327
        %v1330 = vmul.f32 %v1202, %v1327
        %v1331 = vmul.f32 %v1323, %v1327
        %v1332 = vadd.f32 %v1318, %v1328
        %v1333 = vadd.f32 %v1319, %v1329
        %v1334 = vadd.f32 %v1320, %v1330
        %v1335 = vadd.f32 %v1321, %v1331
        %v1336 = vrot.slane %v1081, 7
        %v1337 = vsel %vm1223, %v1222, %v1336
        %v1338 = vlaneseq
        %v1339 = vshrl.u32 %v1338, 7
        %v1340 = vsub.s32 6, %v1339
        %v1341 = vrot.slane %v1083, %v1340
        %v1342 = vmul.f32 %v1226, %v1341
        %v1343 = vmul.f32 %v1225, %v1341
        %v1344 = vmul.f32 %v1224, %v1341
        %v1345 = vmul.f32 %v1337, %v1341
        %v1346 = vadd.f32 %v1332, %v1342
        %v1347 = vadd.f32 %v1333, %v1343
        %v1348 = vadd.f32 %v1334, %v1344
        %v1349 = vadd.f32 %v1335, %v1345
        %v1350 = vld [vmem:[%s8] sm:$0x1]
        %v1352 = vlaneseq
        %v1353 = vshrl.u32 %v1352, 7
        %v1354 = vsub.s32 0, %v1353
        %v1355 = vrot.slane %v1350, %v1354
        %v1357 = vadd.f32 %v1346, %v1355
        %v1358 = vadd.f32 %v1347, %v1355
        %v1359 = vadd.f32 %v1348, %v1355
        %v1360 = vadd.f32 %v1349, %v1355
        %1361 = vst [vmem:[%s599] sm:$0xff] %v1357
        %1362 = vst [vmem:[%s599 + $0x8] sm:$0xff] %v1358
        %1363 = vst [vmem:[%s599 + $0x10] sm:$0xff] %v1359
        %1364 = vst [vmem:[%s599 + $0x18] sm:$0xff] %v1360
        // Predicated region
        $region81: #{_lambda_.2} parent=55 // pred_check
          %p1365 = pneg %p1060
        $region82: #{_lambda_.2} parent=55 // pred_check_branch
          %1367 = sbr.rel (%p1365) target = $region84
        $region83: #{_lambda_.2} parent=55 // pred_region
          %1368 = vst [vmem:[%s603] sm:$0x1] 0.0
          %1369 = vst [vmem:[%s606] sm:$0x1] 0.0
        $region84: #{_lambda_.2} parent=55 // pred_fallthru
          _
        %v1370 = vld [vmem:[%s603] sm:$0x1]
        %v1371 = vadd.f32 %v1357, %v1358
        %v1372 = vadd.f32 %v1371, %v1359
        %v1373 = vadd.f32 %v1372, %v1360
        %v1374 = vrot.slane %v1373, 4
        %v1375 = vadd.f32 %v1373, %v1374
        %v1376 = vrot.slane %v1375, 2
        %v1377 = vadd.f32 %v1375, %v1376
        %v1378 = vrot.slane %v1377, 1
        %v1379 = vadd.f32 %v1377, %v1378
        %v1380 = vadd.f32 %v1370, %v1379
        %1381 = vst [vmem:[%s603] sm:$0x1] %v1380
        %v1382 = vld [vmem:[%s606] sm:$0x1]
        %v1383 = vmul.f32 %v1357, %v1357
        %v1384 = vmul.f32 %v1358, %v1358
        %v1385 = vmul.f32 %v1359, %v1359
        %v1386 = vmul.f32 %v1360, %v1360
        %v1387 = vadd.f32 %v1383, %v1384
        %v1388 = vadd.f32 %v1387, %v1385
        %v1389 = vadd.f32 %v1388, %v1386
        %v1390 = vrot.slane %v1389, 4
        %v1391 = vadd.f32 %v1389, %v1390
        %v1392 = vrot.slane %v1391, 2
        %v1393 = vadd.f32 %v1391, %v1392
        %v1394 = vrot.slane %v1393, 1
        %v1395 = vadd.f32 %v1393, %v1394
        %v1396 = vadd.f32 %v1382, %v1395
        %1397 = vst [vmem:[%s606] sm:$0x1] %v1396
        %s1398 = smul.u32 4, %s36
        %p1399 = scmp.lt.s32.totalorder %s35, 1
        %s1400 = scalar_select %p1399, %s35, 1
        %p1401 = scmp.lt.s32.totalorder %s1398, 15
        %s1402 = scalar_select %p1401, %s1398, 15
        %s1403 = smul.addr %s1400, 16
        %s1404 = sadd.s32 %s1402, %s1403
        %s1405 = smul.addr %s1404, 8
        %s1406 = scalar_lea.vmem %s9, %s1405
        %p1407 = scmp.lt.s32.totalorder %s35, 1
        %s1408 = scalar_select %p1407, %s35, 1
        %s1409 = scalar_lea.vmem %s10, %s1408
        %p1410 = scmp.lt.s32.totalorder %s35, 1
        %s1411 = scalar_select %p1410, %s35, 1
        %s1412 = scalar_lea.vmem %s11, %s1411
        // Predicated region
        $region85: #{_lambda_.2} parent=55 // pred_check
          %p1413 = pneg %p289
        $region86: #{_lambda_.2} parent=55 // pred_check_branch
          %1415 = sbr.rel (%p1413) target = $region88
        $region87: #{_lambda_.2} parent=55 // pred_region
          %s1416 = smul.u32 4, %s36
        $region88: #{_lambda_.2} parent=55 // pred_fallthru
          _
        // Predicated region
        $region89: #{_lambda_.2} parent=55 // pred_check
          %p1417 = pneg %p315
        $region90: #{_lambda_.2} parent=55 // pred_check_branch
          %1419 = sbr.rel (%p1417) target = $region92
        $region91: #{_lambda_.2} parent=55 // pred_region
          _
        $region92: #{_lambda_.2} parent=55 // pred_fallthru
          _
        // Predicated region
        $region93: #{_lambda_.2} parent=55 // pred_check
          %p1420 = pneg %p341
        $region94: #{_lambda_.2} parent=55 // pred_check_branch
          %1422 = sbr.rel (%p1420) target = $region96
        $region95: #{_lambda_.2} parent=55 // pred_region
          _
        $region96: #{_lambda_.2} parent=55 // pred_fallthru
          _
      $region56: #{_lambda_.2} parent=5 // pred_fallthru
        _
      %p1423 = scmp.le.s32.totalorder 2, %s26
      // Predicated region
      $region97: #{_lambda_.2} parent=5 // pred_check
        %p1424 = pneg %p1423
      $region98: #{_lambda_.2} parent=5 // pred_check_branch
        %1426 = sbr.rel (%p1424) target = $region100
      $region99: #{_lambda_.2} parent=5 // pred_region
        %s1427 = ssub.s32 %s26, 2
        // Predicated region
        $region101: #{_lambda_.2} parent=99 // pred_check
          %p1428 = pneg %p295
        $region102: #{_lambda_.2} parent=99 // pred_check_branch
          %1430 = sbr.rel (%p1428) target = $region104
        $region103: #{_lambda_.2} parent=99 // pred_region
          %s1431 = smul.u32 4, %s38
          %p1432 = scmp.lt.s32.totalorder %s37, 1
          %s1433 = scalar_select %p1432, %s37, 1
          %p1434 = scmp.lt.s32.totalorder %s1431, 15
          %s1435 = scalar_select %p1434, %s1431, 15
          %s1436 = smul.addr %s1433, 16
          %s1437 = sadd.s32 %s1435, %s1436
          %s1438 = smul.addr %s1437, 8
          %s1439 = scalar_lea.vmem %s9, %s1438
        $region104: #{_lambda_.2} parent=99 // pred_fallthru
          _
        // Predicated region
        $region105: #{_lambda_.2} parent=99 // pred_check
          %p1440 = pneg %p321
        $region106: #{_lambda_.2} parent=99 // pred_check_branch
          %1442 = sbr.rel (%p1440) target = $region108
        $region107: #{_lambda_.2} parent=99 // pred_region
          %p1443 = scmp.lt.s32.totalorder %s37, 1
          %s1444 = scalar_select %p1443, %s37, 1
          %s1445 = scalar_lea.vmem %s10, %s1444
        $region108: #{_lambda_.2} parent=99 // pred_fallthru
          _
        // Predicated region
        $region109: #{_lambda_.2} parent=99 // pred_check
          %p1446 = pneg %p347
        $region110: #{_lambda_.2} parent=99 // pred_check_branch
          %1448 = sbr.rel (%p1446) target = $region112
        $region111: #{_lambda_.2} parent=99 // pred_region
          %p1449 = scmp.lt.s32.totalorder %s37, 1
          %s1450 = scalar_select %p1449, %s37, 1
          %s1451 = scalar_lea.vmem %s11, %s1450
        $region112: #{_lambda_.2} parent=99 // pred_fallthru
          _
      $region100: #{_lambda_.2} parent=5 // pred_fallthru
        _
    $region6: #{_lambda_.2} parent=1 // loop_footer
      %s30 = sadd.s32 1, %s26
    $region7: #{_lambda_.2} parent=1 // loop_footer_branch
      %25 = sbr.rel target = $region3
    $region8: #{_lambda_.2} parent=1 // loop_exit
      _
    %1452 = vsyncpa [#allocation4], 1
    %s1453 = scalar_lea.sflag [#allocation4], 1
    %1454 = vsyncpa %s1453, 1
    %1455 = vsyncpa [#allocation6], 1
    %s1456 = scalar_lea.sflag [#allocation6], 1
    %1457 = vsyncpa %s1456, 1
    %1458 = vsyncpa [#allocation9], 1
    %1459 = vsyncpa [#allocation12], 1

</llo_original>
